<compile_context>
chip_gen: v5e
topology: v5e:2x2
jax: 0.10.0
libtpu: 0.0.40
codegen_flags: <defaults>
</compile_context>

<pallas_src>
import functools

import jax
import jax.numpy as jnp
import numpy as np
from jax.experimental import pallas as pl
from jax.experimental.pallas import tpu as pltpu


def _round_up(x, m):
    return ((x + m - 1) // m) * m


def _vmem_capacity_bytes():
    try:
        cap = getattr(pltpu.get_tpu_info(), "vmem_capacity_bytes", None)
        if cap:
            return int(cap)
    except Exception:
        pass
    return 64 * 1024 * 1024          # conservative fallback (v7x-sized)


# ----------------------------- Pallas kernel --------------------------------

def _conv_bn_relu_kernel(x_ref, w_ref, s_ref, b_ref, o_ref, lhs_ref, *,
                         kh, kw, stride, dilation, th, wo, cin, tn, use_relu):
    """One (batch * row-tile, cout-tile) grid step.

    x_ref:   (1, BH, Wp, Cin)     bf16 haloed input row tile
    w_ref:   (1, KH*KW*Cin, TN)   bf16 conv weight tile (resident if 1 tile)
    s_ref:   (1, 1, TN)           f32  BN scale (1.0 if no BN)
    b_ref:   (1, 1, TN)           f32  BN bias  (0.0 if no BN)
    o_ref:   (1, TH, Wo, TN)      output tile (lane-dense last dim)
    lhs_ref: (TH*Wo, KH*KW*Cin)   bf16 im2col scratch (persists across cout)
    """
    c = pl.program_id(2)
    p = th * wo
    row_span = (th - 1) * stride + 1
    col_span = (wo - 1) * stride + 1

    # Build the im2col LHS once per row tile.  The cout axis is innermost and
    # "arbitrary", so c == 0 always runs first on the core that later uses it.
    @pl.when(c == 0)
    def _():
        xb = x_ref[0]                                   # (BH, Wp, Cin)
        for ki in range(kh):                            # static KH*KW unroll
            r0 = ki * dilation
            for kj in range(kw):
                c0 = kj * dilation
                win = xb[r0:r0 + row_span:stride, c0:c0 + col_span:stride, :]
                t = ki * kw + kj
                lhs_ref[:, t * cin:(t + 1) * cin] = win.reshape(p, cin)

    # Single big-K matmul (K = KH*KW*Cin) with f32 accumulation on the MXU.
    acc = jnp.dot(lhs_ref[...], w_ref[0],
                  preferred_element_type=jnp.float32)    # (P, TN) f32
    y = acc * s_ref[0] + b_ref[0]                        # fused BN (f32)
    if use_relu:
        y = jnp.maximum(y, 0.0)                          # fused ReLU
    o_ref[0] = y.reshape(th, wo, tn).astype(o_ref.dtype)


# ------------------------------ JAX glue -------------------------------------

def _concat_grid_nhwc(x):
    # Mirrors ConvBNReLU.concat_grid: channel 0 varies along width,
    # channel 1 varies along height, grid channels come first.
    n, h, w, _ = x.shape
    ch0 = jnp.broadcast_to(jnp.linspace(-1.0, 1.0, w)[None, :], (h, w))
    ch1 = jnp.broadcast_to(jnp.linspace(-1.0, 1.0, h)[:, None], (h, w))
    grid = jnp.stack([ch0, ch1], axis=-1)                      # (H, W, 2)
    grid = jnp.broadcast_to(grid[None], (n, h, w, 2)).astype(x.dtype)
    return jnp.concatenate([grid, x], axis=-1)


def conv_bn_relu(x_nchw, weight_hwio, bn_params=None, *, stride=1, padding=1,
                 dilation=1, use_bn=True, use_relu=True, coord=False,
                 eps=1e-5, row_tile=None):
    """Fused Conv2d(bias=False) + BatchNorm2d + ReLU.

    weight_hwio: (KH, KW, Cin_eff, Cout); bn_params: (gamma, beta, mean, var).
    """
    x = jnp.transpose(x_nchw, (0, 2, 3, 1))                    # NCHW -> NHWC
    if coord:
        x = _concat_grid_nhwc(x)
    n, h, w, cin = x.shape
    kh, kw, wcin, cout = weight_hwio.shape
    assert wcin == cin, (wcin, cin)

    ho = (h + 2 * padding - dilation * (kh - 1) - 1) // stride + 1
    wo = (w + 2 * padding - dilation * (kw - 1) - 1) // stride + 1

    # --- BatchNorm (inference running stats) as an f32 epilogue scale/bias ---
    # TODO(synk): training-mode batch statistics are not reproduced.
    if use_bn:
        gamma, beta, mean, var = bn_params
        scale = gamma.astype(jnp.float32) / jnp.sqrt(var.astype(jnp.float32) + eps)
        bias = beta.astype(jnp.float32) - mean.astype(jnp.float32) * scale
    else:
        scale = jnp.ones((cout,), jnp.float32)
        bias = jnp.zeros((cout,), jnp.float32)

    # --- weight slab (KH*KW*Cin, Coutp), Cout padded to a multiple of 128 ----
    coutp = _round_up(max(cout, 128), 128)
    k_total = kh * kw * cin
    w_bf16 = jnp.pad(weight_hwio.astype(jnp.float32).reshape(k_total, cout),
                     ((0, 0), (0, coutp - cout))).astype(jnp.bfloat16)

    tn = 256 if coutp % 256 == 0 else 128      # 256-wide keeps v6e/v7x MXU full
    ct = coutp // tn
    w3 = w_bf16.reshape(k_total, ct, tn).transpose(1, 0, 2)    # (CT, K, TN)
    s3 = jnp.pad(scale, (0, coutp - cout)).reshape(ct, 1, tn)
    b3 = jnp.pad(bias, (0, coutp - cout)).reshape(ct, 1, tn)

    out_itemsize = jnp.dtype(x.dtype).itemsize
    wp = w + 2 * padding

    # --- generation-aware VMEM budget (counts sublane / 128-lane padding) ----
    vmem_cap = _vmem_capacity_bytes()
    vmem_limit = (vmem_cap * 3) // 4           # ~96 MiB v5e/v6e, ~48 MiB v7x
    budget = (vmem_limit * 2) // 3

    def _vmem_bytes(th_):
        bh_ = (th_ - 1) * stride + dilation * (kh - 1) + 1
        p_ = th_ * wo
        x_tile = bh_ * _round_up(wp, 16) * _round_up(cin, 128) * 2     # bf16
        out_sub = 8 if out_itemsize >= 4 else 16
        out_tile = th_ * _round_up(wo, out_sub) * tn * out_itemsize
        lhs = _round_up(p_, 16) * _round_up(k_total, 128) * 2          # scratch
        acc = _round_up(p_, 8) * tn * 4                                # f32 temps
        w_res = _round_up(k_total, 16) * tn * 2
        vecs = 2 * 8 * tn * 4
        return (2 * (x_tile + out_tile) + lhs + 2 * acc
                + 2 * (w_res + vecs) + (2 << 20))

    if row_tile is None:
        th = max(1, min(ho, pl.cdiv(4096, wo)))        # big tiles by default
    else:
        th = max(1, min(int(row_tile), ho))
    while th > 1 and _vmem_bytes(th) > budget:
        th //= 2
    while n * pl.cdiv(ho, th) < 2 and th > 1:          # keep both v7x TCs busy
        th = (th + 1) // 2

    rt = pl.cdiv(ho, th)
    bh = (th - 1) * stride + dilation * (kh - 1) + 1

    # --- spatial zero-pad (+ extra bottom rows so the last tile has a halo) --
    hp = h + 2 * padding
    extra = max(0, (rt - 1) * th * stride + bh - hp)
    xp = jnp.pad(x, ((0, 0), (padding, padding + extra),
                     (padding, padding), (0, 0)))

    # Haloed row tiles (duplication ~ BH/(TH*stride), small for large TH).
    xt = jnp.stack([xp[:, r * th * stride: r * th * stride + bh]
                    for r in range(rt)], axis=1)               # (N,RT,BH,Wp,C)
    xt = xt.reshape(n * rt, bh, wp, cin).astype(jnp.bfloat16)

    kernel = functools.partial(
        _conv_bn_relu_kernel, kh=kh, kw=kw, stride=stride, dilation=dilation,
        th=th, wo=wo, cin=cin, tn=tn, use_relu=use_relu)

    cost = pl.CostEstimate(
        flops=2 * n * ho * wo * k_total * coutp,
        transcendentals=0,
        bytes_accessed=int(xt.nbytes + w3.nbytes + s3.nbytes + b3.nbytes
                           + n * rt * th * wo * coutp * out_itemsize))

    out = pl.pallas_call(
        kernel,
        out_shape=jax.ShapeDtypeStruct((n, rt * th, wo, coutp), x.dtype),
        grid=(n, rt, ct),
        in_specs=[
            pl.BlockSpec((1, bh, wp, cin),
                         lambda b, r, c: (b * rt + r, 0, 0, 0)),
            pl.BlockSpec((1, k_total, tn), lambda b, r, c: (c, 0, 0)),
            pl.BlockSpec((1, 1, tn), lambda b, r, c: (c, 0, 0)),
            pl.BlockSpec((1, 1, tn), lambda b, r, c: (c, 0, 0)),
        ],
        out_specs=pl.BlockSpec((1, th, wo, tn), lambda b, r, c: (b, r, 0, c)),
        scratch_shapes=[pltpu.VMEM((th * wo, k_total), jnp.bfloat16)],
        compiler_params=pltpu.CompilerParams(
            dimension_semantics=("parallel", "parallel", "arbitrary"),
            vmem_limit_bytes=int(vmem_limit)),
        cost_estimate=cost,
    )(xt, w3, s3, b3)

    out = out[:, :ho, :, :cout]                    # drop row / channel padding
    return jnp.transpose(out, (0, 3, 1, 2))        # NHWC -> NCHW


# ------------------------------ reference ------------------------------------

def _concat_grid_nchw(x):
    nb, _, hh, ww = x.shape
    ch0 = jnp.broadcast_to(jnp.linspace(-1.0, 1.0, ww)[None, :], (hh, ww))
    ch1 = jnp.broadcast_to(jnp.linspace(-1.0, 1.0, hh)[:, None], (hh, ww))
    grid = jnp.broadcast_to(jnp.stack([ch0, ch1], 0)[None], (nb, 2, hh, ww))
    return jnp.concatenate([grid.astype(x.dtype), x], axis=1)


def _reference(x_nchw, weight_hwio, bn_params, *, stride, padding, dilation,
               use_bn, use_relu, eps=1e-5):
    w_oihw = jnp.transpose(weight_hwio, (3, 2, 0, 1))
    y = jax.lax.conv_general_dilated(
        x_nchw, w_oihw, window_strides=(stride, stride),
        padding=[(padding, padding), (padding, padding)],
        rhs_dilation=(dilation, dilation),
        dimension_numbers=("NCHW", "OIHW", "NCHW"))
    if use_bn:
        gamma, beta, mean, var = bn_params
        scale = gamma / jnp.sqrt(var + eps)
        b = beta - mean * scale
        y = y * scale[None, :, None, None] + b[None, :, None, None]
    if use_relu:
        y = jnp.maximum(y, 0.0)
    return y


# --------------------------------- main ---------------------------------------

if __name__ == "__main__":
    N, CIN, H, W = 2, 4, 16, 16
    COUT, KH, KW = 8, 3, 3

    key = jax.random.PRNGKey(0)
    k1, k2, k3 = jax.random.split(key, 3)
    x = jax.random.normal(k1, (N, CIN, H, W), dtype=jnp.float32)
    w1 = (jax.random.normal(k2, (KH, KW, CIN, COUT), dtype=jnp.float32)
          * (1.0 / np.sqrt(KH * KW * CIN)))
    w2 = (jax.random.normal(k3, (KH, KW, CIN + 2, COUT), dtype=jnp.float32)
          * (1.0 / np.sqrt(KH * KW * (CIN + 2))))

    gamma = jnp.linspace(0.5, 1.5, COUT, dtype=jnp.float32)
    beta = jnp.linspace(-0.2, 0.2, COUT, dtype=jnp.float32)
    mean = jnp.linspace(-0.1, 0.1, COUT, dtype=jnp.float32)
    var = jnp.linspace(0.5, 2.0, COUT, dtype=jnp.float32)
    bn = (gamma, beta, mean, var)

    # Test 1: default auto row-tiling (single row tile), BN + ReLU.
    out1 = conv_bn_relu(x, w1, bn, stride=1, padding=1, dilation=1,
                        use_bn=True, use_relu=True, coord=False)
    out1 = jax.block_until_ready(out1)
    ref1 = _reference(x, w1, bn, stride=1, padding=1, dilation=1,
                      use_bn=True, use_relu=True)
    np.testing.assert_allclose(np.asarray(out1), np.asarray(ref1),
                               rtol=3e-2, atol=3e-2)
    assert out1.shape == (N, COUT, H, W)

    # Test 2: multi row-tile (halo path), coord channels, no ReLU.
    out2 = conv_bn_relu(x, w2, bn, stride=1, padding=1, dilation=1,
                        use_bn=True, use_relu=False, coord=True, row_tile=4)
    out2 = jax.block_until_ready(out2)
    ref2 = _reference(_concat_grid_nchw(x), w2, bn, stride=1, padding=1,
                      dilation=1, use_bn=True, use_relu=False)
    np.testing.assert_allclose(np.asarray(out2), np.asarray(ref2),
                               rtol=3e-2, atol=3e-2)
    assert out2.shape == (N, COUT, H, W)

    print("KERNEL_OK")
</pallas_src>

<mosaic_0001>
module attributes {stable_mosaic.version = 11 : i64} {
  func.func @_conv_bn_relu_kernel(%arg0: i32, %arg1: i32, %arg2: i32, %arg3: memref<1x18x18x4xbf16, #tpu.memory_space<vmem>>, %arg4: memref<1x36x128xbf16, #tpu.memory_space<vmem>>, %arg5: memref<1x1x128xf32, #tpu.memory_space<vmem>>, %arg6: memref<1x1x128xf32, #tpu.memory_space<vmem>>, %arg7: memref<1x16x16x128xf32, #tpu.memory_space<vmem>>, %arg8: memref<256x36xbf16, #tpu.memory_space<vmem>>) attributes {dimension_semantics = [#tpu.dimension_semantics<parallel>, #tpu.dimension_semantics<parallel>, #tpu.dimension_semantics<arbitrary>], iteration_bounds = array<i64: 2, 1, 1>, scalar_prefetch = 0 : i64, scratch_operands = 1 : i64, tpu.core_type = #tpu.core_type<tc>, window_params = [{transform_indices = @transform_0, window_bounds = array<i64: 1, 18, 18, 4>}, {transform_indices = @transform_1, window_bounds = array<i64: 1, 36, 128>}, {transform_indices = @transform_2, window_bounds = array<i64: 1, 1, 128>}, {transform_indices = @transform_3, window_bounds = array<i64: 1, 1, 128>}, {transform_indices = @transform_4, window_bounds = array<i64: 1, 16, 16, 128>}]} {
    %c0_i32 = arith.constant 0 : i32
    %0 = arith.cmpi eq, %arg2, %c0_i32 : i32
    %1 = arith.extui %0 : i1 to i32
    %c0_i32_0 = arith.constant 0 : i32
    %2 = arith.cmpi ne, %1, %c0_i32_0 : i32
    scf.if %2 {
      %c0_16 = arith.constant 0 : index
      %c0_17 = arith.constant 0 : index
      %c0_18 = arith.constant 0 : index
      %c0_19 = arith.constant 0 : index
      %21 = vector.load %arg3[%c0_16, %c0_17, %c0_18, %c0_19] : memref<1x18x18x4xbf16, #tpu.memory_space<vmem>>, vector<1x18x18x4xbf16>
      %22 = vector.shape_cast %21 : vector<1x18x18x4xbf16> to vector<18x18x4xbf16>
      %23 = vector.extract_strided_slice %22 {offsets = [0, 0, 0], sizes = [16, 16, 4], strides = [1, 1, 1]} : vector<18x18x4xbf16> to vector<16x16x4xbf16>
      %24 = vector.shape_cast %23 : vector<16x16x4xbf16> to vector<256x4xbf16>
      %c0_20 = arith.constant 0 : index
      %c0_21 = arith.constant 0 : index
      %25 = vector.load %arg8[%c0_20, %c0_21] : memref<256x36xbf16, #tpu.memory_space<vmem>>, vector<256x4xbf16>
      tpu.vector_store %arg8[%c0_20, %c0_21], %24 {strides = array<i32>} : memref<256x36xbf16, #tpu.memory_space<vmem>>, vector<256x4xbf16>,
      %26 = vector.extract_strided_slice %22 {offsets = [0, 1, 0], sizes = [16, 16, 4], strides = [1, 1, 1]} : vector<18x18x4xbf16> to vector<16x16x4xbf16>
      %27 = vector.shape_cast %26 : vector<16x16x4xbf16> to vector<256x4xbf16>
      %c0_22 = arith.constant 0 : index
      %c4 = arith.constant 4 : index
      %28 = vector.load %arg8[%c0_22, %c4] : memref<256x36xbf16, #tpu.memory_space<vmem>>, vector<256x4xbf16>
      tpu.vector_store %arg8[%c0_22, %c4], %27 {strides = array<i32>} : memref<256x36xbf16, #tpu.memory_space<vmem>>, vector<256x4xbf16>,
      %29 = vector.extract_strided_slice %22 {offsets = [0, 2, 0], sizes = [16, 16, 4], strides = [1, 1, 1]} : vector<18x18x4xbf16> to vector<16x16x4xbf16>
      %30 = vector.shape_cast %29 : vector<16x16x4xbf16> to vector<256x4xbf16>
      %c0_23 = arith.constant 0 : index
      %c8 = arith.constant 8 : index
      %31 = vector.load %arg8[%c0_23, %c8] : memref<256x36xbf16, #tpu.memory_space<vmem>>, vector<256x4xbf16>
      tpu.vector_store %arg8[%c0_23, %c8], %30 {strides = array<i32>} : memref<256x36xbf16, #tpu.memory_space<vmem>>, vector<256x4xbf16>,
      %32 = vector.extract_strided_slice %22 {offsets = [1, 0, 0], sizes = [16, 16, 4], strides = [1, 1, 1]} : vector<18x18x4xbf16> to vector<16x16x4xbf16>
      %33 = vector.shape_cast %32 : vector<16x16x4xbf16> to vector<256x4xbf16>
      %c0_24 = arith.constant 0 : index
      %c12 = arith.constant 12 : index
      %34 = vector.load %arg8[%c0_24, %c12] : memref<256x36xbf16, #tpu.memory_space<vmem>>, vector<256x4xbf16>
      tpu.vector_store %arg8[%c0_24, %c12], %33 {strides = array<i32>} : memref<256x36xbf16, #tpu.memory_space<vmem>>, vector<256x4xbf16>,
      %35 = vector.extract_strided_slice %22 {offsets = [1, 1, 0], sizes = [16, 16, 4], strides = [1, 1, 1]} : vector<18x18x4xbf16> to vector<16x16x4xbf16>
      %36 = vector.shape_cast %35 : vector<16x16x4xbf16> to vector<256x4xbf16>
      %c0_25 = arith.constant 0 : index
      %c16 = arith.constant 16 : index
      %37 = vector.load %arg8[%c0_25, %c16] : memref<256x36xbf16, #tpu.memory_space<vmem>>, vector<256x4xbf16>
      tpu.vector_store %arg8[%c0_25, %c16], %36 {strides = array<i32>} : memref<256x36xbf16, #tpu.memory_space<vmem>>, vector<256x4xbf16>,
      %38 = vector.extract_strided_slice %22 {offsets = [1, 2, 0], sizes = [16, 16, 4], strides = [1, 1, 1]} : vector<18x18x4xbf16> to vector<16x16x4xbf16>
      %39 = vector.shape_cast %38 : vector<16x16x4xbf16> to vector<256x4xbf16>
      %c0_26 = arith.constant 0 : index
      %c20 = arith.constant 20 : index
      %40 = vector.load %arg8[%c0_26, %c20] : memref<256x36xbf16, #tpu.memory_space<vmem>>, vector<256x4xbf16>
      tpu.vector_store %arg8[%c0_26, %c20], %39 {strides = array<i32>} : memref<256x36xbf16, #tpu.memory_space<vmem>>, vector<256x4xbf16>,
      %41 = vector.extract_strided_slice %22 {offsets = [2, 0, 0], sizes = [16, 16, 4], strides = [1, 1, 1]} : vector<18x18x4xbf16> to vector<16x16x4xbf16>
      %42 = vector.shape_cast %41 : vector<16x16x4xbf16> to vector<256x4xbf16>
      %c0_27 = arith.constant 0 : index
      %c24 = arith.constant 24 : index
      %43 = vector.load %arg8[%c0_27, %c24] : memref<256x36xbf16, #tpu.memory_space<vmem>>, vector<256x4xbf16>
      tpu.vector_store %arg8[%c0_27, %c24], %42 {strides = array<i32>} : memref<256x36xbf16, #tpu.memory_space<vmem>>, vector<256x4xbf16>,
      %44 = vector.extract_strided_slice %22 {offsets = [2, 1, 0], sizes = [16, 16, 4], strides = [1, 1, 1]} : vector<18x18x4xbf16> to vector<16x16x4xbf16>
      %45 = vector.shape_cast %44 : vector<16x16x4xbf16> to vector<256x4xbf16>
      %c0_28 = arith.constant 0 : index
      %c28 = arith.constant 28 : index
      %46 = vector.load %arg8[%c0_28, %c28] : memref<256x36xbf16, #tpu.memory_space<vmem>>, vector<256x4xbf16>
      tpu.vector_store %arg8[%c0_28, %c28], %45 {strides = array<i32>} : memref<256x36xbf16, #tpu.memory_space<vmem>>, vector<256x4xbf16>,
      %47 = vector.extract_strided_slice %22 {offsets = [2, 2, 0], sizes = [16, 16, 4], strides = [1, 1, 1]} : vector<18x18x4xbf16> to vector<16x16x4xbf16>
      %48 = vector.shape_cast %47 : vector<16x16x4xbf16> to vector<256x4xbf16>
      %c0_29 = arith.constant 0 : index
      %c32 = arith.constant 32 : index
      %49 = vector.load %arg8[%c0_29, %c32] : memref<256x36xbf16, #tpu.memory_space<vmem>>, vector<256x4xbf16>
      tpu.vector_store %arg8[%c0_29, %c32], %48 {strides = array<i32>} : memref<256x36xbf16, #tpu.memory_space<vmem>>, vector<256x4xbf16>,
    } else {
    }
    %c0 = arith.constant 0 : index
    %c0_1 = arith.constant 0 : index
    %3 = vector.load %arg8[%c0, %c0_1] : memref<256x36xbf16, #tpu.memory_space<vmem>>, vector<256x36xbf16>
    %c0_2 = arith.constant 0 : index
    %c0_3 = arith.constant 0 : index
    %c0_4 = arith.constant 0 : index
    %4 = vector.load %arg4[%c0_2, %c0_3, %c0_4] : memref<1x36x128xbf16, #tpu.memory_space<vmem>>, vector<1x36x128xbf16>
    %5 = vector.shape_cast %4 : vector<1x36x128xbf16> to vector<36x128xbf16>
    %cst = arith.constant dense<0.000000e+00> : vector<256x128xf32>
    %6 = tpu.matmul %3, %5, %cst {dimension_numbers = #tpu.dot_dimension_numbers<[1], [0], [0], [1], [0, 0, 1, 1], [], []>} : vector<256x36xbf16>, vector<36x128xbf16>, vector<256x128xf32> -> vector<256x128xf32>
    %c0_5 = arith.constant 0 : index
    %c0_6 = arith.constant 0 : index
    %c0_7 = arith.constant 0 : index
    %7 = vector.load %arg5[%c0_5, %c0_6, %c0_7] : memref<1x1x128xf32, #tpu.memory_space<vmem>>, vector<1x1x128xf32>
    %8 = vector.shape_cast %7 : vector<1x1x128xf32> to vector<1x128xf32>
    %9 = vector.broadcast %8 : vector<1x128xf32> to vector<256x128xf32>
    %10 = arith.mulf %6, %9 : vector<256x128xf32>
    %c0_8 = arith.constant 0 : index
    %c0_9 = arith.constant 0 : index
    %c0_10 = arith.constant 0 : index
    %11 = vector.load %arg6[%c0_8, %c0_9, %c0_10] : memref<1x1x128xf32, #tpu.memory_space<vmem>>, vector<1x1x128xf32>
    %12 = vector.shape_cast %11 : vector<1x1x128xf32> to vector<1x128xf32>
    %13 = vector.broadcast %12 : vector<1x128xf32> to vector<256x128xf32>
    %14 = arith.addf %10, %13 : vector<256x128xf32>
    %cst_11 = arith.constant 0.000000e+00 : f32
    %15 = vector.broadcast %cst_11 : f32 to vector<256x128xf32>
    %16 = arith.maximumf %14, %15 : vector<256x128xf32>
    %17 = vector.shape_cast %16 : vector<256x128xf32> to vector<16x16x128xf32>
    %c0_12 = arith.constant 0 : index
    %c0_13 = arith.constant 0 : index
    %c0_14 = arith.constant 0 : index
    %c0_15 = arith.constant 0 : index
    %18 = vector.load %arg7[%c0_12, %c0_13, %c0_14, %c0_15] : memref<1x16x16x128xf32, #tpu.memory_space<vmem>>, vector<1x16x16x128xf32>
    %19 = vector.shape_cast %18 : vector<1x16x16x128xf32> to vector<16x16x128xf32>
    %20 = vector.shape_cast %17 : vector<16x16x128xf32> to vector<1x16x16x128xf32>
    tpu.vector_store %arg7[%c0_12, %c0_13, %c0_14, %c0_15], %20 {strides = array<i32>} : memref<1x16x16x128xf32, #tpu.memory_space<vmem>>, vector<1x16x16x128xf32>,
    return
  }
  func.func @transform_0(%arg0: i32, %arg1: i32, %arg2: i32) -> (i32, i32, i32, i32) {
    %c1_i32 = arith.constant 1 : i32
    %0 = arith.muli %arg0, %c1_i32 : i32
    %1 = arith.addi %0, %arg1 : i32
    %c0_i32 = arith.constant 0 : i32
    %c0_i32_0 = arith.constant 0 : i32
    %c0_i32_1 = arith.constant 0 : i32
    %c0_i32_2 = arith.constant 0 : i32
    return %1, %c0_i32, %c0_i32_0, %c0_i32_1 : i32, i32, i32, i32
  }
  func.func @transform_1(%arg0: i32, %arg1: i32, %arg2: i32) -> (i32, i32, i32) {
    %c0_i32 = arith.constant 0 : i32
    %c0_i32_0 = arith.constant 0 : i32
    %c0_i32_1 = arith.constant 0 : i32
    return %arg2, %c0_i32, %c0_i32_0 : i32, i32, i32
  }
  func.func @transform_2(%arg0: i32, %arg1: i32, %arg2: i32) -> (i32, i32, i32) {
    %c0_i32 = arith.constant 0 : i32
    %c0_i32_0 = arith.constant 0 : i32
    %c0_i32_1 = arith.constant 0 : i32
    return %arg2, %c0_i32, %c0_i32_0 : i32, i32, i32
  }
  func.func @transform_3(%arg0: i32, %arg1: i32, %arg2: i32) -> (i32, i32, i32) {
    %c0_i32 = arith.constant 0 : i32
    %c0_i32_0 = arith.constant 0 : i32
    %c0_i32_1 = arith.constant 0 : i32
    return %arg2, %c0_i32, %c0_i32_0 : i32, i32, i32
  }
  func.func @transform_4(%arg0: i32, %arg1: i32, %arg2: i32) -> (i32, i32, i32, i32) {
    %c0_i32 = arith.constant 0 : i32
    %c0_i32_0 = arith.constant 0 : i32
    return %arg0, %arg1, %c0_i32, %arg2 : i32, i32, i32, i32
  }
}

</mosaic_0001>

<llo_original>
// kernel: tpu_custom_call.1
$region0: #{tpu_custom_call.1}
  #allocation0 [shape = 'u32[]', space=smem, size = 0x4, offset = 0x4, fixed_abs, tag = 'smem constant byte address 0x4 - core index']
  #allocation1 [shape = 'u32[72,128]{1,0:T(1,128)}', space=vmem, size = 0x9000, scoped, tag = 'internal scratch']
  #allocation2 [shape = 'bf16[256,36]{1,0:T(8,128)(2,1)}', space=vmem, size = 0x10000, scoped, tag = 'scratch operand']
  %s0 = inlined_call_operand.vmem [shape: bf16[2,18,18,4], index: 0, kind: input, shape index: {}]
  %s1 = inlined_call_operand.vmem [shape: bf16[1,36,128], index: 1, kind: input, shape index: {}]
  %s2 = inlined_call_operand.vmem [shape: f32[1,1,128], index: 2, kind: input, shape index: {}]
  %s3 = inlined_call_operand.vmem [shape: f32[1,1,128], index: 3, kind: input, shape index: {}]
  %s4 = inlined_call_operand.hbm [shape: f32[2,16,16,128], index: 4, kind: output, shape index: {}]
  %s5 = sld [smem:[#allocation0]]
  $region53: #{tpu_custom_call.1} parent=0
    _
  %s7 = ssub.s32 1, %s5
  %s8 = scalar_select 0, %s7, %s5
  $region1: #{tpu_custom_call.1} parent=0
    #allocation3 [shape = 'u8[262144]{0}', space=vmem, size = 0x40000, scoped, tag = 'output window, operand 0']
    #allocation4 [shape = 's32[2]{0}', space=sflag, size = 0x8, scoped, tag = 'scoped memory for tpu_custom_call.1']
    %9 = vsyncpa [#allocation4], 0
    %s10 = scalar_lea.sflag [#allocation4], 1
    %11 = vsyncpa %s10, 0
    loop: start=0, step=1, limit=4
    $region2: #{tpu_custom_call.1} parent=1 // loop_pre_header
      _
    $region3: #{tpu_custom_call.1} parent=1 // loop_header
      %s13 = sphi 0, %s17
      %p14 = scmp.ge.s32.totalorder %s13, 4
      %s20 = sphi 0, %s39
      %s21 = sphi 0, %s35
      %s22 = sphi 0, %s31
      %s23 = sphi 0, %s20
      %s24 = sphi 0, %s21
      %s25 = sphi 0, %s22
      %s26 = sphi 0, %s23
      %s27 = sphi 0, %s24
      %s28 = sphi 0, %s25
      %s44 = sphi 0, %s46
      %s47 = sphi 0, %s44
      %s48 = sphi 0, %s47
      %s64 = sphi 0, %s48
      %s70 = sphi 0, %s72
      %s73 = sphi 0, %s70
      %s74 = sphi 0, %s73
      %s90 = sphi 0, %s74
      %s96 = sphi 0, %s98
      %s99 = sphi 0, %s96
      %s100 = sphi 0, %s99
      %s116 = sphi 0, %s100
      %s122 = sphi 0, %s124
      %s125 = sphi 0, %s122
      %s126 = sphi 0, %s125
      %s142 = sphi 0, %s126
      %s152 = sphi 0, %s154
      %s155 = sphi 0, %s152
      %s156 = sphi 0, %s155
      %s172 = sphi 0, %s156
    $region4: #{tpu_custom_call.1} parent=1 // loop_header_branch
      %16 = sbr.rel (%p14) target = $region8
    $region5: #{tpu_custom_call.1} parent=1 // loop_body
      %s18 = ssub.s32 %s13, 1
      %s19 = ssub.s32 %s13, 2
      %s29 = sadd.s32 1, %s22
      %p30 = scmp.ge.s32.totalorder %s29, 1
      %s31 = scalar_select %p30, 0, %s29
      %s32 = sadd.s32 1, %s21
      %s33 = scalar_select %p30, %s32, %s21
      %p34 = scmp.ge.s32.totalorder %s33, 1
      %s35 = scalar_select %p34, 0, %s33
      %s36 = sadd.s32 1, %s20
      %s37 = scalar_select %p34, %s36, %s20
      %p38 = scmp.ge.s32.totalorder %s37, 2
      %s39 = scalar_select %p38, 0, %s37
      %s40 = sadd.s32 %s20, %s21
      %s41 = sadd.s32 %s39, %s35
      %s42 = ssub.s32 %s40, %s41
      %p43 = scmp.eq.s32.totalorder %s42, 0
      %s45 = sadd.s32 %s44, 1
      %s46 = scalar_select %p43, %s44, %s45
      %p49 = pneg %p43
      %p50 = scmp.eq.s32.totalorder %s13, 1
      %p51 = por %p49, %p50
      %p52 = scmp.ne.s32.totalorder %s44, %s47
      %p53 = scmp.eq.s32.totalorder %s13, 0
      %p54 = por %p52, %p53
      %p55 = scmp.ne.s32.totalorder %s44, %s47
      %p56 = scmp.eq.s32.totalorder %s18, 1
      %p57 = por %p55, %p56
      %p58 = scmp.ne.s32.totalorder %s47, %s48
      %p59 = scmp.eq.s32.totalorder %s18, 0
      %p60 = por %p58, %p59
      %p61 = scmp.ne.s32.totalorder %s47, %s48
      %p62 = scmp.eq.s32.totalorder %s19, 1
      %p63 = por %p61, %p62
      %p65 = scmp.ne.s32.totalorder %s48, %s64
      %p66 = scmp.eq.s32.totalorder %s19, 0
      %p67 = por %p65, %p66
      %s68 = ssub.s32 %s22, %s31
      %p69 = scmp.eq.s32.totalorder %s68, 0
      %s71 = sadd.s32 %s70, 1
      %s72 = scalar_select %p69, %s70, %s71
      %p75 = pneg %p69
      %p76 = scmp.eq.s32.totalorder %s13, 1
      %p77 = por %p75, %p76
      %p78 = scmp.ne.s32.totalorder %s70, %s73
      %p79 = scmp.eq.s32.totalorder %s13, 0
      %p80 = por %p78, %p79
      %p81 = scmp.ne.s32.totalorder %s70, %s73
      %p82 = scmp.eq.s32.totalorder %s18, 1
      %p83 = por %p81, %p82
      %p84 = scmp.ne.s32.totalorder %s73, %s74
      %p85 = scmp.eq.s32.totalorder %s18, 0
      %p86 = por %p84, %p85
      %p87 = scmp.ne.s32.totalorder %s73, %s74
      %p88 = scmp.eq.s32.totalorder %s19, 1
      %p89 = por %p87, %p88
      %p91 = scmp.ne.s32.totalorder %s74, %s90
      %p92 = scmp.eq.s32.totalorder %s19, 0
      %p93 = por %p91, %p92
      %s94 = ssub.s32 %s22, %s31
      %p95 = scmp.eq.s32.totalorder %s94, 0
      %s97 = sadd.s32 %s96, 1
      %s98 = scalar_select %p95, %s96, %s97
      %p101 = pneg %p95
      %p102 = scmp.eq.s32.totalorder %s13, 1
      %p103 = por %p101, %p102
      %p104 = scmp.ne.s32.totalorder %s96, %s99
      %p105 = scmp.eq.s32.totalorder %s13, 0
      %p106 = por %p104, %p105
      %p107 = scmp.ne.s32.totalorder %s96, %s99
      %p108 = scmp.eq.s32.totalorder %s18, 1
      %p109 = por %p107, %p108
      %p110 = scmp.ne.s32.totalorder %s99, %s100
      %p111 = scmp.eq.s32.totalorder %s18, 0
      %p112 = por %p110, %p111
      %p113 = scmp.ne.s32.totalorder %s99, %s100
      %p114 = scmp.eq.s32.totalorder %s19, 1
      %p115 = por %p113, %p114
      %p117 = scmp.ne.s32.totalorder %s100, %s116
      %p118 = scmp.eq.s32.totalorder %s19, 0
      %p119 = por %p117, %p118
      %s120 = ssub.s32 %s22, %s31
      %p121 = scmp.eq.s32.totalorder %s120, 0
      %s123 = sadd.s32 %s122, 1
      %s124 = scalar_select %p121, %s122, %s123
      %p127 = pneg %p121
      %p128 = scmp.eq.s32.totalorder %s13, 1
      %p129 = por %p127, %p128
      %p130 = scmp.ne.s32.totalorder %s122, %s125
      %p131 = scmp.eq.s32.totalorder %s13, 0
      %p132 = por %p130, %p131
      %p133 = scmp.ne.s32.totalorder %s122, %s125
      %p134 = scmp.eq.s32.totalorder %s18, 1
      %p135 = por %p133, %p134
      %p136 = scmp.ne.s32.totalorder %s125, %s126
      %p137 = scmp.eq.s32.totalorder %s18, 0
      %p138 = por %p136, %p137
      %p139 = scmp.ne.s32.totalorder %s125, %s126
      %p140 = scmp.eq.s32.totalorder %s19, 1
      %p141 = por %p139, %p140
      %p143 = scmp.ne.s32.totalorder %s126, %s142
      %p144 = scmp.eq.s32.totalorder %s19, 0
      %p145 = por %p143, %p144
      %s146 = ssub.s32 %s20, %s39
      %s147 = ssub.s32 %s21, %s35
      %s148 = sor.u32 %s146, %s147
      %s149 = ssub.s32 %s22, %s31
      %s150 = sor.u32 %s148, %s149
      %p151 = scmp.eq.s32.totalorder %s150, 0
      %s153 = sadd.s32 %s152, 1
      %s154 = scalar_select %p151, %s152, %s153
      %p157 = pneg %p151
      %p158 = scmp.eq.s32.totalorder %s13, 1
      %p159 = por %p157, %p158
      %p160 = scmp.ne.s32.totalorder %s152, %s155
      %p161 = scmp.eq.s32.totalorder %s13, 0
      %p162 = por %p160, %p161
      %p163 = scmp.ne.s32.totalorder %s152, %s155
      %p164 = scmp.eq.s32.totalorder %s18, 1
      %p165 = por %p163, %p164
      %p166 = scmp.ne.s32.totalorder %s155, %s156
      %p167 = scmp.eq.s32.totalorder %s18, 0
      %p168 = por %p166, %p167
      %p169 = scmp.ne.s32.totalorder %s155, %s156
      %p170 = scmp.eq.s32.totalorder %s19, 1
      %p171 = por %p169, %p170
      %p173 = scmp.ne.s32.totalorder %s156, %s172
      %p174 = scmp.eq.s32.totalorder %s19, 0
      %p175 = por %p173, %p174
      %p176 = scmp.le.s32.totalorder 1, %s13
      %p177 = scmp.lt.s32.totalorder %s13, 3
      %p178 = pnand %p176, %p177
      %p179 = pneg %p178
      // Predicated region
      $region9: #{tpu_custom_call.1} parent=5 // pred_check
        _
      $region10: #{tpu_custom_call.1} parent=5 // pred_check_branch
        %181 = sbr.rel (%p178) target = $region12
      $region11: #{tpu_custom_call.1} parent=5 // pred_region
        %s182 = ssub.s32 %s13, 1
        // Predicated region
        $region13: #{tpu_custom_call.1} parent=11 // pred_check
          %p183 = pneg %p86
        $region14: #{tpu_custom_call.1} parent=11 // pred_check_branch
          %185 = sbr.rel (%p183) target = $region16
        $region15: #{tpu_custom_call.1} parent=11 // pred_region
          %p186 = scmp.lt.s32.totalorder %s25, 0
          %s187 = scalar_select %p186, %s25, 0
          %s188 = smul.addr %s187, 5
          %s189 = smul.addr %s188, 4
          %s190 = scalar_lea.vmem %s1, %s189
        $region16: #{tpu_custom_call.1} parent=11 // pred_fallthru
          _
        // Predicated region
        $region17: #{tpu_custom_call.1} parent=11 // pred_check
          %p191 = pneg %p112
        $region18: #{tpu_custom_call.1} parent=11 // pred_check_branch
          %193 = sbr.rel (%p191) target = $region20
        $region19: #{tpu_custom_call.1} parent=11 // pred_region
          %p194 = scmp.lt.s32.totalorder %s25, 0
          %s195 = scalar_select %p194, %s25, 0
          %s196 = scalar_lea.vmem %s2, %s195
        $region20: #{tpu_custom_call.1} parent=11 // pred_fallthru
          _
        // Predicated region
        $region21: #{tpu_custom_call.1} parent=11 // pred_check
          %p197 = pneg %p138
        $region22: #{tpu_custom_call.1} parent=11 // pred_check_branch
          %199 = sbr.rel (%p197) target = $region24
        $region23: #{tpu_custom_call.1} parent=11 // pred_region
          %p200 = scmp.lt.s32.totalorder %s25, 0
          %s201 = scalar_select %p200, %s25, 0
          %s202 = scalar_lea.vmem %s3, %s201
        $region24: #{tpu_custom_call.1} parent=11 // pred_fallthru
          _
      $region12: #{tpu_custom_call.1} parent=5 // pred_fallthru
        _
      %p203 = scmp.lt.s32.totalorder %s13, 2
      // Predicated region
      $region25: #{tpu_custom_call.1} parent=5 // pred_check
        %p204 = pneg %p203
      $region26: #{tpu_custom_call.1} parent=5 // pred_check_branch
        %206 = sbr.rel (%p204) target = $region28
      $region27: #{tpu_custom_call.1} parent=5 // pred_region
        // Predicated region
        $region29: #{tpu_custom_call.1} parent=27 // pred_check
          %p207 = pneg %p54
        $region30: #{tpu_custom_call.1} parent=27 // pred_check_branch
          %209 = sbr.rel (%p207) target = $region32
        $region31: #{tpu_custom_call.1} parent=27 // pred_region
          %s210 = sadd.s32 %s20, %s21
          %p211 = scmp.lt.s32.totalorder %s210, 1
          %s212 = scalar_select %p211, %s210, 1
          %s213 = smul.addr %s212, 54
          %s214 = smul.addr %s213, 4
          %s215 = scalar_lea.vmem %s0, %s214
          %s216 = sadd.s32 %s20, %s21
        $region32: #{tpu_custom_call.1} parent=27 // pred_fallthru
          _
      $region28: #{tpu_custom_call.1} parent=5 // pred_fallthru
        _
      %p217 = scmp.le.s32.totalorder 1, %s13
      %p218 = scmp.lt.s32.totalorder %s13, 3
      %p219 = pnand %p217, %p218
      %p220 = pneg %p219
      // Predicated region
      $region33: #{tpu_custom_call.1} parent=5 // pred_check
        _
      $region34: #{tpu_custom_call.1} parent=5 // pred_check_branch
        %222 = sbr.rel (%p219) target = $region36
      $region35: #{tpu_custom_call.1} parent=5 // pred_region
        %s223 = ssub.s32 %s13, 1
        %s224 = sadd.s32 %s23, %s24
        %p225 = scmp.lt.s32.totalorder %s224, 1
        %s226 = scalar_select %p225, %s224, 1
        %s227 = smul.addr %s226, 54
        %s228 = smul.addr %s227, 4
        %s229 = scalar_lea.vmem %s0, %s228
        %p230 = pneg %p60
        %p231 = pneg %p57
        %p232 = scmp.lt.s32.totalorder %s25, 0
        %s233 = scalar_select %p232, %s25, 0
        %s234 = smul.addr %s233, 5
        %s235 = smul.addr %s234, 4
        %s236 = scalar_lea.vmem %s1, %s235
        %p237 = pneg %p86
        %p238 = pneg %p83
        %p239 = scmp.lt.s32.totalorder %s25, 0
        %s240 = scalar_select %p239, %s25, 0
        %s241 = scalar_lea.vmem %s2, %s240
        %p242 = pneg %p112
        %p243 = pneg %p109
        %p244 = scmp.lt.s32.totalorder %s25, 0
        %s245 = scalar_select %p244, %s25, 0
        %s246 = scalar_lea.vmem %s3, %s245
        %p247 = pneg %p138
        %p248 = pneg %p135
        %p249 = pneg %p168
        %p250 = pneg %p165
        %s251 = sand.u32 %s155, 1
        %s252 = scalar_lea.sflag [#allocation4], %s251
        %s253 = sand.u32 %s155, 1
        %s254 = smul.addr %s253, 256
        %s255 = scalar_lea.vmem [#allocation3], %s254
        %s256 = sadd.s32 %s23, %s24
        %p257 = scmp.lt.s32.totalorder %s256, 1
        %s258 = scalar_select %p257, %s256, 1
        %s259 = smul.addr %s258, 54
        %s260 = smul.addr %s259, 4
        %s261 = scalar_lea.vmem %s0, %s260
        %s262 = sadd.s32 %s23, %s24
        %p263 = scmp.lt.s32.totalorder %s25, 0
        %s264 = scalar_select %p263, %s25, 0
        %s265 = smul.addr %s264, 5
        %s266 = smul.addr %s265, 4
        %s267 = scalar_lea.vmem %s1, %s266
        %p268 = scmp.lt.s32.totalorder %s25, 0
        %s269 = scalar_select %p268, %s25, 0
        %s270 = scalar_lea.vmem %s2, %s269
        %p271 = scmp.lt.s32.totalorder %s25, 0
        %s272 = scalar_select %p271, %s25, 0
        %s273 = scalar_lea.vmem %s3, %s272
        %s274 = smul.u32 16, %s24
        %p276 = scmp.eq.s32.totalorder %s25, 0
        // Predicated region
        $region37: #{tpu_custom_call.1} parent=35 // pred_check
          %p277 = pneg %p276
        $region38: #{tpu_custom_call.1} parent=35 // pred_check_branch
          %279 = sbr.rel (%p277) target = $region40
        $region39: #{tpu_custom_call.1} parent=35 // pred_region
          %v280 = vld [vmem:[%s261] sm:$0xf]
          %v281 = vld [vmem:[%s261 + $0x4] sm:$0xf]
          %v282 = vld [vmem:[%s261 + $0x8] sm:$0x1]
          %v283 = vld [vmem:[%s261 + $0xc] sm:$0xf]
          %v284 = vld [vmem:[%s261 + $0x10] sm:$0xf]
          %v285 = vld [vmem:[%s261 + $0x14] sm:$0x1]
          %v286 = vld [vmem:[%s261 + $0x18] sm:$0xf]
          %v287 = vld [vmem:[%s261 + $0x1c] sm:$0xf]
          %v288 = vld [vmem:[%s261 + $0x20] sm:$0x1]
          %v289 = vld [vmem:[%s261 + $0x24] sm:$0xf]
          %v290 = vld [vmem:[%s261 + $0x28] sm:$0xf]
          %v291 = vld [vmem:[%s261 + $0x2c] sm:$0x1]
          %v292 = vld [vmem:[%s261 + $0x30] sm:$0xf]
          %v293 = vld [vmem:[%s261 + $0x34] sm:$0xf]
          %v294 = vld [vmem:[%s261 + $0x38] sm:$0x1]
          %v295 = vld [vmem:[%s261 + $0x3c] sm:$0xf]
          %v296 = vld [vmem:[%s261 + $0x40] sm:$0xf]
          %v297 = vld [vmem:[%s261 + $0x44] sm:$0x1]
          %v298 = vld [vmem:[%s261 + $0x48] sm:$0xf]
          %v299 = vld [vmem:[%s261 + $0x4c] sm:$0xf]
          %v300 = vld [vmem:[%s261 + $0x50] sm:$0x1]
          %v301 = vld [vmem:[%s261 + $0x54] sm:$0xf]
          %v302 = vld [vmem:[%s261 + $0x58] sm:$0xf]
          %v303 = vld [vmem:[%s261 + $0x5c] sm:$0x1]
          %v304 = vld [vmem:[%s261 + $0x60] sm:$0xf]
          %v305 = vld [vmem:[%s261 + $0x64] sm:$0xf]
          %v306 = vld [vmem:[%s261 + $0x68] sm:$0x1]
          %v307 = vld [vmem:[%s261 + $0x6c] sm:$0xf]
          %v308 = vld [vmem:[%s261 + $0x70] sm:$0xf]
          %v309 = vld [vmem:[%s261 + $0x74] sm:$0x1]
          %v310 = vld [vmem:[%s261 + $0x78] sm:$0xf]
          %v311 = vld [vmem:[%s261 + $0x7c] sm:$0xf]
          %v312 = vld [vmem:[%s261 + $0x80] sm:$0x1]
          %v313 = vld [vmem:[%s261 + $0x84] sm:$0xf]
          %v314 = vld [vmem:[%s261 + $0x88] sm:$0xf]
          %v315 = vld [vmem:[%s261 + $0x8c] sm:$0x1]
          %v316 = vld [vmem:[%s261 + $0x90] sm:$0xf]
          %v317 = vld [vmem:[%s261 + $0x94] sm:$0xf]
          %v318 = vld [vmem:[%s261 + $0x98] sm:$0x1]
          %v319 = vld [vmem:[%s261 + $0x9c] sm:$0xf]
          %v320 = vld [vmem:[%s261 + $0xa0] sm:$0xf]
          %v321 = vld [vmem:[%s261 + $0xa4] sm:$0x1]
          %v322 = vld [vmem:[%s261 + $0xa8] sm:$0xf]
          %v323 = vld [vmem:[%s261 + $0xac] sm:$0xf]
          %v324 = vld [vmem:[%s261 + $0xb0] sm:$0x1]
          %v325 = vld [vmem:[%s261 + $0xb4] sm:$0xf]
          %v326 = vld [vmem:[%s261 + $0xb8] sm:$0xf]
          %v327 = vld [vmem:[%s261 + $0xbc] sm:$0x1]
          %v328 = vld [vmem:[%s261 + $0xc0] sm:$0xf]
          %v329 = vld [vmem:[%s261 + $0xc4] sm:$0xf]
          %v330 = vld [vmem:[%s261 + $0xc8] sm:$0x1]
          %v331 = vld [vmem:[%s261 + $0xcc] sm:$0xf]
          %v332 = vld [vmem:[%s261 + $0xd0] sm:$0xf]
          %v333 = vld [vmem:[%s261 + $0xd4] sm:$0x1]
          %vm334 = vcmask 27648
          %335 = vst.msk [vmem:[#allocation2] sm:$0xf] %vm334, %v280
          %336 = vst.msk [vmem:[#allocation2 + $0x4] sm:$0xf] %vm334, %v281
          %337 = vst.msk [vmem:[#allocation2 + $0x8] sm:$0xf] %vm334, %v283
          %338 = vst.msk [vmem:[#allocation2 + $0xc] sm:$0xf] %vm334, %v284
          %339 = vst.msk [vmem:[#allocation2 + $0x10] sm:$0xf] %vm334, %v286
          %340 = vst.msk [vmem:[#allocation2 + $0x14] sm:$0xf] %vm334, %v287
          %341 = vst.msk [vmem:[#allocation2 + $0x18] sm:$0xf] %vm334, %v289
          %342 = vst.msk [vmem:[#allocation2 + $0x1c] sm:$0xf] %vm334, %v290
          %343 = vst.msk [vmem:[#allocation2 + $0x20] sm:$0xf] %vm334, %v292
          %344 = vst.msk [vmem:[#allocation2 + $0x24] sm:$0xf] %vm334, %v293
          %345 = vst.msk [vmem:[#allocation2 + $0x28] sm:$0xf] %vm334, %v295
          %346 = vst.msk [vmem:[#allocation2 + $0x2c] sm:$0xf] %vm334, %v296
          %347 = vst.msk [vmem:[#allocation2 + $0x30] sm:$0xf] %vm334, %v298
          %348 = vst.msk [vmem:[#allocation2 + $0x34] sm:$0xf] %vm334, %v299
          %349 = vst.msk [vmem:[#allocation2 + $0x38] sm:$0xf] %vm334, %v301
          %350 = vst.msk [vmem:[#allocation2 + $0x3c] sm:$0xf] %vm334, %v302
          %351 = vst.msk [vmem:[#allocation2 + $0x40] sm:$0xf] %vm334, %v304
          %352 = vst.msk [vmem:[#allocation2 + $0x44] sm:$0xf] %vm334, %v305
          %353 = vst.msk [vmem:[#allocation2 + $0x48] sm:$0xf] %vm334, %v307
          %354 = vst.msk [vmem:[#allocation2 + $0x4c] sm:$0xf] %vm334, %v308
          %355 = vst.msk [vmem:[#allocation2 + $0x50] sm:$0xf] %vm334, %v310
          %356 = vst.msk [vmem:[#allocation2 + $0x54] sm:$0xf] %vm334, %v311
          %357 = vst.msk [vmem:[#allocation2 + $0x58] sm:$0xf] %vm334, %v313
          %358 = vst.msk [vmem:[#allocation2 + $0x5c] sm:$0xf] %vm334, %v314
          %359 = vst.msk [vmem:[#allocation2 + $0x60] sm:$0xf] %vm334, %v316
          %360 = vst.msk [vmem:[#allocation2 + $0x64] sm:$0xf] %vm334, %v317
          %361 = vst.msk [vmem:[#allocation2 + $0x68] sm:$0xf] %vm334, %v319
          %362 = vst.msk [vmem:[#allocation2 + $0x6c] sm:$0xf] %vm334, %v320
          %363 = vst.msk [vmem:[#allocation2 + $0x70] sm:$0xf] %vm334, %v322
          %364 = vst.msk [vmem:[#allocation2 + $0x74] sm:$0xf] %vm334, %v323
          %365 = vst.msk [vmem:[#allocation2 + $0x78] sm:$0xf] %vm334, %v325
          %366 = vst.msk [vmem:[#allocation2 + $0x7c] sm:$0xf] %vm334, %v326
          %vm367 = vsmask.f32 3328
          %vm368 = vsmask.f32 7440
          %vm369 = vmor %vm367, %vm368
          %v371 = vshrl.u32 %v280, 16
          %v373 = vrot.slane %v371, 4
          %v374 = vshll.u32 %v280, 16
          %v376 = vrot.slane %v374, 5
          %v377 = vor.u32 %v373, %v376
          %v378 = vrot.slane %v377, 4
          %v380 = vshll.u32 %v281, 16
          %v382 = vrot.slane %v380, 5
          %v383 = vsel %vm369, %v378, %v382
          %v384 = vshrl.u32 %v281, 16
          %v386 = vrot.slane %v384, 4
          %v387 = vor.u32 %v386, %v382
          %v388 = vrot.slane %v387, 4
          %v390 = vshll.u32 %v282, 16
          %v392 = vrot.slane %v390, 5
          %v393 = vsel %vm369, %v388, %v392
          %v395 = vshrl.u32 %v283, 16
          %v397 = vrot.slane %v395, 4
          %v398 = vshll.u32 %v283, 16
          %v400 = vrot.slane %v398, 5
          %v401 = vor.u32 %v397, %v400
          %v402 = vrot.slane %v401, 4
          %v404 = vshll.u32 %v284, 16
          %v406 = vrot.slane %v404, 5
          %v407 = vsel %vm369, %v402, %v406
          %v408 = vshrl.u32 %v284, 16
          %v410 = vrot.slane %v408, 4
          %v411 = vor.u32 %v410, %v406
          %v412 = vrot.slane %v411, 4
          %v414 = vshll.u32 %v285, 16
          %v416 = vrot.slane %v414, 5
          %v417 = vsel %vm369, %v412, %v416
          %v419 = vshrl.u32 %v286, 16
          %v421 = vrot.slane %v419, 4
          %v422 = vshll.u32 %v286, 16
          %v424 = vrot.slane %v422, 5
          %v425 = vor.u32 %v421, %v424
          %v426 = vrot.slane %v425, 4
          %v428 = vshll.u32 %v287, 16
          %v430 = vrot.slane %v428, 5
          %v431 = vsel %vm369, %v426, %v430
          %v432 = vshrl.u32 %v287, 16
          %v434 = vrot.slane %v432, 4
          %v435 = vor.u32 %v434, %v430
          %v436 = vrot.slane %v435, 4
          %v438 = vshll.u32 %v288, 16
          %v440 = vrot.slane %v438, 5
          %v441 = vsel %vm369, %v436, %v440
          %v443 = vshrl.u32 %v289, 16
          %v445 = vrot.slane %v443, 4
          %v446 = vshll.u32 %v289, 16
          %v448 = vrot.slane %v446, 5
          %v449 = vor.u32 %v445, %v448
          %v450 = vrot.slane %v449, 4
          %v452 = vshll.u32 %v290, 16
          %v454 = vrot.slane %v452, 5
          %v455 = vsel %vm369, %v450, %v454
          %v456 = vshrl.u32 %v290, 16
          %v458 = vrot.slane %v456, 4
          %v459 = vor.u32 %v458, %v454
          %v460 = vrot.slane %v459, 4
          %v462 = vshll.u32 %v291, 16
          %v464 = vrot.slane %v462, 5
          %v465 = vsel %vm369, %v460, %v464
          %v467 = vshrl.u32 %v292, 16
          %v469 = vrot.slane %v467, 4
          %v470 = vshll.u32 %v292, 16
          %v472 = vrot.slane %v470, 5
          %v473 = vor.u32 %v469, %v472
          %v474 = vrot.slane %v473, 4
          %v476 = vshll.u32 %v293, 16
          %v478 = vrot.slane %v476, 5
          %v479 = vsel %vm369, %v474, %v478
          %v480 = vshrl.u32 %v293, 16
          %v482 = vrot.slane %v480, 4
          %v483 = vor.u32 %v482, %v478
          %v484 = vrot.slane %v483, 4
          %v486 = vshll.u32 %v294, 16
          %v488 = vrot.slane %v486, 5
          %v489 = vsel %vm369, %v484, %v488
          %v491 = vshrl.u32 %v295, 16
          %v493 = vrot.slane %v491, 4
          %v494 = vshll.u32 %v295, 16
          %v496 = vrot.slane %v494, 5
          %v497 = vor.u32 %v493, %v496
          %v498 = vrot.slane %v497, 4
          %v500 = vshll.u32 %v296, 16
          %v502 = vrot.slane %v500, 5
          %v503 = vsel %vm369, %v498, %v502
          %v504 = vshrl.u32 %v296, 16
          %v506 = vrot.slane %v504, 4
          %v507 = vor.u32 %v506, %v502
          %v508 = vrot.slane %v507, 4
          %v510 = vshll.u32 %v297, 16
          %v512 = vrot.slane %v510, 5
          %v513 = vsel %vm369, %v508, %v512
          %v515 = vshrl.u32 %v298, 16
          %v517 = vrot.slane %v515, 4
          %v518 = vshll.u32 %v298, 16
          %v520 = vrot.slane %v518, 5
          %v521 = vor.u32 %v517, %v520
          %v522 = vrot.slane %v521, 4
          %v524 = vshll.u32 %v299, 16
          %v526 = vrot.slane %v524, 5
          %v527 = vsel %vm369, %v522, %v526
          %v528 = vshrl.u32 %v299, 16
          %v530 = vrot.slane %v528, 4
          %v531 = vor.u32 %v530, %v526
          %v532 = vrot.slane %v531, 4
          %v534 = vshll.u32 %v300, 16
          %v536 = vrot.slane %v534, 5
          %v537 = vsel %vm369, %v532, %v536
          %v539 = vshrl.u32 %v301, 16
          %v541 = vrot.slane %v539, 4
          %v542 = vshll.u32 %v301, 16
          %v544 = vrot.slane %v542, 5
          %v545 = vor.u32 %v541, %v544
          %v546 = vrot.slane %v545, 4
          %v548 = vshll.u32 %v302, 16
          %v550 = vrot.slane %v548, 5
          %v551 = vsel %vm369, %v546, %v550
          %v552 = vshrl.u32 %v302, 16
          %v554 = vrot.slane %v552, 4
          %v555 = vor.u32 %v554, %v550
          %v556 = vrot.slane %v555, 4
          %v558 = vshll.u32 %v303, 16
          %v560 = vrot.slane %v558, 5
          %v561 = vsel %vm369, %v556, %v560
          %v563 = vshrl.u32 %v304, 16
          %v565 = vrot.slane %v563, 4
          %v566 = vshll.u32 %v304, 16
          %v568 = vrot.slane %v566, 5
          %v569 = vor.u32 %v565, %v568
          %v570 = vrot.slane %v569, 4
          %v572 = vshll.u32 %v305, 16
          %v574 = vrot.slane %v572, 5
          %v575 = vsel %vm369, %v570, %v574
          %v576 = vshrl.u32 %v305, 16
          %v578 = vrot.slane %v576, 4
          %v579 = vor.u32 %v578, %v574
          %v580 = vrot.slane %v579, 4
          %v582 = vshll.u32 %v306, 16
          %v584 = vrot.slane %v582, 5
          %v585 = vsel %vm369, %v580, %v584
          %v587 = vshrl.u32 %v307, 16
          %v589 = vrot.slane %v587, 4
          %v590 = vshll.u32 %v307, 16
          %v592 = vrot.slane %v590, 5
          %v593 = vor.u32 %v589, %v592
          %v594 = vrot.slane %v593, 4
          %v596 = vshll.u32 %v308, 16
          %v598 = vrot.slane %v596, 5
          %v599 = vsel %vm369, %v594, %v598
          %v600 = vshrl.u32 %v308, 16
          %v602 = vrot.slane %v600, 4
          %v603 = vor.u32 %v602, %v598
          %v604 = vrot.slane %v603, 4
          %v606 = vshll.u32 %v309, 16
          %v608 = vrot.slane %v606, 5
          %v609 = vsel %vm369, %v604, %v608
          %v611 = vshrl.u32 %v310, 16
          %v613 = vrot.slane %v611, 4
          %v614 = vshll.u32 %v310, 16
          %v616 = vrot.slane %v614, 5
          %v617 = vor.u32 %v613, %v616
          %v618 = vrot.slane %v617, 4
          %v620 = vshll.u32 %v311, 16
          %v622 = vrot.slane %v620, 5
          %v623 = vsel %vm369, %v618, %v622
          %v624 = vshrl.u32 %v311, 16
          %v626 = vrot.slane %v624, 4
          %v627 = vor.u32 %v626, %v622
          %v628 = vrot.slane %v627, 4
          %v630 = vshll.u32 %v312, 16
          %v632 = vrot.slane %v630, 5
          %v633 = vsel %vm369, %v628, %v632
          %v635 = vshrl.u32 %v313, 16
          %v637 = vrot.slane %v635, 4
          %v638 = vshll.u32 %v313, 16
          %v640 = vrot.slane %v638, 5
          %v641 = vor.u32 %v637, %v640
          %v642 = vrot.slane %v641, 4
          %v644 = vshll.u32 %v314, 16
          %v646 = vrot.slane %v644, 5
          %v647 = vsel %vm369, %v642, %v646
          %v648 = vshrl.u32 %v314, 16
          %v650 = vrot.slane %v648, 4
          %v651 = vor.u32 %v650, %v646
          %v652 = vrot.slane %v651, 4
          %v654 = vshll.u32 %v315, 16
          %v656 = vrot.slane %v654, 5
          %v657 = vsel %vm369, %v652, %v656
          %v659 = vshrl.u32 %v316, 16
          %v661 = vrot.slane %v659, 4
          %v662 = vshll.u32 %v316, 16
          %v664 = vrot.slane %v662, 5
          %v665 = vor.u32 %v661, %v664
          %v666 = vrot.slane %v665, 4
          %v668 = vshll.u32 %v317, 16
          %v670 = vrot.slane %v668, 5
          %v671 = vsel %vm369, %v666, %v670
          %v672 = vshrl.u32 %v317, 16
          %v674 = vrot.slane %v672, 4
          %v675 = vor.u32 %v674, %v670
          %v676 = vrot.slane %v675, 4
          %v678 = vshll.u32 %v318, 16
          %v680 = vrot.slane %v678, 5
          %v681 = vsel %vm369, %v676, %v680
          %v683 = vshrl.u32 %v319, 16
          %v685 = vrot.slane %v683, 4
          %v686 = vshll.u32 %v319, 16
          %v688 = vrot.slane %v686, 5
          %v689 = vor.u32 %v685, %v688
          %v690 = vrot.slane %v689, 4
          %v692 = vshll.u32 %v320, 16
          %v694 = vrot.slane %v692, 5
          %v695 = vsel %vm369, %v690, %v694
          %v696 = vshrl.u32 %v320, 16
          %v698 = vrot.slane %v696, 4
          %v699 = vor.u32 %v698, %v694
          %v700 = vrot.slane %v699, 4
          %v702 = vshll.u32 %v321, 16
          %v704 = vrot.slane %v702, 5
          %v705 = vsel %vm369, %v700, %v704
          %v707 = vshrl.u32 %v322, 16
          %v709 = vrot.slane %v707, 4
          %v710 = vshll.u32 %v322, 16
          %v712 = vrot.slane %v710, 5
          %v713 = vor.u32 %v709, %v712
          %v714 = vrot.slane %v713, 4
          %v716 = vshll.u32 %v323, 16
          %v718 = vrot.slane %v716, 5
          %v719 = vsel %vm369, %v714, %v718
          %v720 = vshrl.u32 %v323, 16
          %v722 = vrot.slane %v720, 4
          %v723 = vor.u32 %v722, %v718
          %v724 = vrot.slane %v723, 4
          %v726 = vshll.u32 %v324, 16
          %v728 = vrot.slane %v726, 5
          %v729 = vsel %vm369, %v724, %v728
          %v731 = vshrl.u32 %v325, 16
          %v733 = vrot.slane %v731, 4
          %v734 = vshll.u32 %v325, 16
          %v736 = vrot.slane %v734, 5
          %v737 = vor.u32 %v733, %v736
          %v738 = vrot.slane %v737, 4
          %v740 = vshll.u32 %v326, 16
          %v742 = vrot.slane %v740, 5
          %v743 = vsel %vm369, %v738, %v742
          %v744 = vshrl.u32 %v326, 16
          %v746 = vrot.slane %v744, 4
          %v747 = vor.u32 %v746, %v742
          %v748 = vrot.slane %v747, 4
          %v750 = vshll.u32 %v327, 16
          %v752 = vrot.slane %v750, 5
          %v753 = vsel %vm369, %v748, %v752
          %754 = vrot.lane.b32.xlu0 %v383, 4
          %v755 = vpop.permute.xlu0 %754
          %756 = vrot.lane.b32.xlu0 %v393, 4
          %v757 = vpop.permute.xlu0 %756
          %758 = vrot.lane.b32.xlu0 %v407, 4
          %v759 = vpop.permute.xlu0 %758
          %760 = vrot.lane.b32.xlu0 %v417, 4
          %v761 = vpop.permute.xlu0 %760
          %762 = vrot.lane.b32.xlu0 %v431, 4
          %v763 = vpop.permute.xlu0 %762
          %764 = vrot.lane.b32.xlu0 %v441, 4
          %v765 = vpop.permute.xlu0 %764
          %766 = vrot.lane.b32.xlu0 %v455, 4
          %v767 = vpop.permute.xlu0 %766
          %768 = vrot.lane.b32.xlu0 %v465, 4
          %v769 = vpop.permute.xlu0 %768
          %770 = vrot.lane.b32.xlu0 %v479, 4
          %v771 = vpop.permute.xlu0 %770
          %772 = vrot.lane.b32.xlu0 %v489, 4
          %v773 = vpop.permute.xlu0 %772
          %774 = vrot.lane.b32.xlu0 %v503, 4
          %v775 = vpop.permute.xlu0 %774
          %776 = vrot.lane.b32.xlu0 %v513, 4
          %v777 = vpop.permute.xlu0 %776
          %778 = vrot.lane.b32.xlu0 %v527, 4
          %v779 = vpop.permute.xlu0 %778
          %780 = vrot.lane.b32.xlu0 %v537, 4
          %v781 = vpop.permute.xlu0 %780
          %782 = vrot.lane.b32.xlu0 %v551, 4
          %v783 = vpop.permute.xlu0 %782
          %784 = vrot.lane.b32.xlu0 %v561, 4
          %v785 = vpop.permute.xlu0 %784
          %786 = vrot.lane.b32.xlu0 %v575, 4
          %v787 = vpop.permute.xlu0 %786
          %788 = vrot.lane.b32.xlu0 %v585, 4
          %v789 = vpop.permute.xlu0 %788
          %790 = vrot.lane.b32.xlu0 %v599, 4
          %v791 = vpop.permute.xlu0 %790
          %792 = vrot.lane.b32.xlu0 %v609, 4
          %v793 = vpop.permute.xlu0 %792
          %794 = vrot.lane.b32.xlu0 %v623, 4
          %v795 = vpop.permute.xlu0 %794
          %796 = vrot.lane.b32.xlu0 %v633, 4
          %v797 = vpop.permute.xlu0 %796
          %798 = vrot.lane.b32.xlu0 %v647, 4
          %v799 = vpop.permute.xlu0 %798
          %800 = vrot.lane.b32.xlu0 %v657, 4
          %v801 = vpop.permute.xlu0 %800
          %802 = vrot.lane.b32.xlu0 %v671, 4
          %v803 = vpop.permute.xlu0 %802
          %804 = vrot.lane.b32.xlu0 %v681, 4
          %v805 = vpop.permute.xlu0 %804
          %806 = vrot.lane.b32.xlu0 %v695, 4
          %v807 = vpop.permute.xlu0 %806
          %808 = vrot.lane.b32.xlu0 %v705, 4
          %v809 = vpop.permute.xlu0 %808
          %810 = vrot.lane.b32.xlu0 %v719, 4
          %v811 = vpop.permute.xlu0 %810
          %812 = vrot.lane.b32.xlu0 %v729, 4
          %v813 = vpop.permute.xlu0 %812
          %814 = vrot.lane.b32.xlu0 %v743, 4
          %v815 = vpop.permute.xlu0 %814
          %816 = vrot.lane.b32.xlu0 %v753, 4
          %v817 = vpop.permute.xlu0 %816
          %vm850 = vcmask 60448
          %851 = vst.msk [vmem:[#allocation2] sm:$0xf] %vm850, %v755
          %852 = vst.msk [vmem:[#allocation2 + $0x4] sm:$0xf] %vm850, %v757
          %853 = vst.msk [vmem:[#allocation2 + $0x8] sm:$0xf] %vm850, %v759
          %854 = vst.msk [vmem:[#allocation2 + $0xc] sm:$0xf] %vm850, %v761
          %855 = vst.msk [vmem:[#allocation2 + $0x10] sm:$0xf] %vm850, %v763
          %856 = vst.msk [vmem:[#allocation2 + $0x14] sm:$0xf] %vm850, %v765
          %857 = vst.msk [vmem:[#allocation2 + $0x18] sm:$0xf] %vm850, %v767
          %858 = vst.msk [vmem:[#allocation2 + $0x1c] sm:$0xf] %vm850, %v769
          %859 = vst.msk [vmem:[#allocation2 + $0x20] sm:$0xf] %vm850, %v771
          %860 = vst.msk [vmem:[#allocation2 + $0x24] sm:$0xf] %vm850, %v773
          %861 = vst.msk [vmem:[#allocation2 + $0x28] sm:$0xf] %vm850, %v775
          %862 = vst.msk [vmem:[#allocation2 + $0x2c] sm:$0xf] %vm850, %v777
          %863 = vst.msk [vmem:[#allocation2 + $0x30] sm:$0xf] %vm850, %v779
          %864 = vst.msk [vmem:[#allocation2 + $0x34] sm:$0xf] %vm850, %v781
          %865 = vst.msk [vmem:[#allocation2 + $0x38] sm:$0xf] %vm850, %v783
          %866 = vst.msk [vmem:[#allocation2 + $0x3c] sm:$0xf] %vm850, %v785
          %867 = vst.msk [vmem:[#allocation2 + $0x40] sm:$0xf] %vm850, %v787
          %868 = vst.msk [vmem:[#allocation2 + $0x44] sm:$0xf] %vm850, %v789
          %869 = vst.msk [vmem:[#allocation2 + $0x48] sm:$0xf] %vm850, %v791
          %870 = vst.msk [vmem:[#allocation2 + $0x4c] sm:$0xf] %vm850, %v793
          %871 = vst.msk [vmem:[#allocation2 + $0x50] sm:$0xf] %vm850, %v795
          %872 = vst.msk [vmem:[#allocation2 + $0x54] sm:$0xf] %vm850, %v797
          %873 = vst.msk [vmem:[#allocation2 + $0x58] sm:$0xf] %vm850, %v799
          %874 = vst.msk [vmem:[#allocation2 + $0x5c] sm:$0xf] %vm850, %v801
          %875 = vst.msk [vmem:[#allocation2 + $0x60] sm:$0xf] %vm850, %v803
          %876 = vst.msk [vmem:[#allocation2 + $0x64] sm:$0xf] %vm850, %v805
          %877 = vst.msk [vmem:[#allocation2 + $0x68] sm:$0xf] %vm850, %v807
          %878 = vst.msk [vmem:[#allocation2 + $0x6c] sm:$0xf] %vm850, %v809
          %879 = vst.msk [vmem:[#allocation2 + $0x70] sm:$0xf] %vm850, %v811
          %880 = vst.msk [vmem:[#allocation2 + $0x74] sm:$0xf] %vm850, %v813
          %881 = vst.msk [vmem:[#allocation2 + $0x78] sm:$0xf] %vm850, %v815
          %882 = vst.msk [vmem:[#allocation2 + $0x7c] sm:$0xf] %vm850, %v817
          %vm931 = vcmask 1042432
          %vm932 = vcmask 1046532
          %vm933 = vmor %vm931, %vm932
          %v934 = vrot.slane %v280, 5
          %v935 = vrot.slane %v934, 4
          %v936 = vrot.slane %v281, 5
          %v937 = vsel %vm933, %v935, %v936
          %v938 = vrot.slane %v936, 4
          %v939 = vrot.slane %v282, 5
          %v940 = vsel %vm933, %v938, %v939
          %v941 = vrot.slane %v283, 5
          %v942 = vrot.slane %v941, 4
          %v943 = vrot.slane %v284, 5
          %v944 = vsel %vm933, %v942, %v943
          %v945 = vrot.slane %v943, 4
          %v946 = vrot.slane %v285, 5
          %v947 = vsel %vm933, %v945, %v946
          %v948 = vrot.slane %v286, 5
          %v949 = vrot.slane %v948, 4
          %v950 = vrot.slane %v287, 5
          %v951 = vsel %vm933, %v949, %v950
          %v952 = vrot.slane %v950, 4
          %v953 = vrot.slane %v288, 5
          %v954 = vsel %vm933, %v952, %v953
          %v955 = vrot.slane %v289, 5
          %v956 = vrot.slane %v955, 4
          %v957 = vrot.slane %v290, 5
          %v958 = vsel %vm933, %v956, %v957
          %v959 = vrot.slane %v957, 4
          %v960 = vrot.slane %v291, 5
          %v961 = vsel %vm933, %v959, %v960
          %v962 = vrot.slane %v292, 5
          %v963 = vrot.slane %v962, 4
          %v964 = vrot.slane %v293, 5
          %v965 = vsel %vm933, %v963, %v964
          %v966 = vrot.slane %v964, 4
          %v967 = vrot.slane %v294, 5
          %v968 = vsel %vm933, %v966, %v967
          %v969 = vrot.slane %v295, 5
          %v970 = vrot.slane %v969, 4
          %v971 = vrot.slane %v296, 5
          %v972 = vsel %vm933, %v970, %v971
          %v973 = vrot.slane %v971, 4
          %v974 = vrot.slane %v297, 5
          %v975 = vsel %vm933, %v973, %v974
          %v976 = vrot.slane %v298, 5
          %v977 = vrot.slane %v976, 4
          %v978 = vrot.slane %v299, 5
          %v979 = vsel %vm933, %v977, %v978
          %v980 = vrot.slane %v978, 4
          %v981 = vrot.slane %v300, 5
          %v982 = vsel %vm933, %v980, %v981
          %v983 = vrot.slane %v301, 5
          %v984 = vrot.slane %v983, 4
          %v985 = vrot.slane %v302, 5
          %v986 = vsel %vm933, %v984, %v985
          %v987 = vrot.slane %v985, 4
          %v988 = vrot.slane %v303, 5
          %v989 = vsel %vm933, %v987, %v988
          %v990 = vrot.slane %v304, 5
          %v991 = vrot.slane %v990, 4
          %v992 = vrot.slane %v305, 5
          %v993 = vsel %vm933, %v991, %v992
          %v994 = vrot.slane %v992, 4
          %v995 = vrot.slane %v306, 5
          %v996 = vsel %vm933, %v994, %v995
          %v997 = vrot.slane %v307, 5
          %v998 = vrot.slane %v997, 4
          %v999 = vrot.slane %v308, 5
          %v1000 = vsel %vm933, %v998, %v999
          %v1001 = vrot.slane %v999, 4
          %v1002 = vrot.slane %v309, 5
          %v1003 = vsel %vm933, %v1001, %v1002
          %v1004 = vrot.slane %v310, 5
          %v1005 = vrot.slane %v1004, 4
          %v1006 = vrot.slane %v311, 5
          %v1007 = vsel %vm933, %v1005, %v1006
          %v1008 = vrot.slane %v1006, 4
          %v1009 = vrot.slane %v312, 5
          %v1010 = vsel %vm933, %v1008, %v1009
          %v1011 = vrot.slane %v313, 5
          %v1012 = vrot.slane %v1011, 4
          %v1013 = vrot.slane %v314, 5
          %v1014 = vsel %vm933, %v1012, %v1013
          %v1015 = vrot.slane %v1013, 4
          %v1016 = vrot.slane %v315, 5
          %v1017 = vsel %vm933, %v1015, %v1016
          %v1018 = vrot.slane %v316, 5
          %v1019 = vrot.slane %v1018, 4
          %v1020 = vrot.slane %v317, 5
          %v1021 = vsel %vm933, %v1019, %v1020
          %v1022 = vrot.slane %v1020, 4
          %v1023 = vrot.slane %v318, 5
          %v1024 = vsel %vm933, %v1022, %v1023
          %v1025 = vrot.slane %v319, 5
          %v1026 = vrot.slane %v1025, 4
          %v1027 = vrot.slane %v320, 5
          %v1028 = vsel %vm933, %v1026, %v1027
          %v1029 = vrot.slane %v1027, 4
          %v1030 = vrot.slane %v321, 5
          %v1031 = vsel %vm933, %v1029, %v1030
          %v1032 = vrot.slane %v322, 5
          %v1033 = vrot.slane %v1032, 4
          %v1034 = vrot.slane %v323, 5
          %v1035 = vsel %vm933, %v1033, %v1034
          %v1036 = vrot.slane %v1034, 4
          %v1037 = vrot.slane %v324, 5
          %v1038 = vsel %vm933, %v1036, %v1037
          %v1039 = vrot.slane %v325, 5
          %v1040 = vrot.slane %v1039, 4
          %v1041 = vrot.slane %v326, 5
          %v1042 = vsel %vm933, %v1040, %v1041
          %v1043 = vrot.slane %v1041, 4
          %v1044 = vrot.slane %v327, 5
          %v1045 = vsel %vm933, %v1043, %v1044
          %1046 = vrot.lane.b32.xlu0 %v937, 8
          %v1047 = vpop.permute.xlu0 %1046
          %1048 = vrot.lane.b32.xlu0 %v940, 8
          %v1049 = vpop.permute.xlu0 %1048
          %1050 = vrot.lane.b32.xlu0 %v944, 8
          %v1051 = vpop.permute.xlu0 %1050
          %1052 = vrot.lane.b32.xlu0 %v947, 8
          %v1053 = vpop.permute.xlu0 %1052
          %1054 = vrot.lane.b32.xlu0 %v951, 8
          %v1055 = vpop.permute.xlu0 %1054
          %1056 = vrot.lane.b32.xlu0 %v954, 8
          %v1057 = vpop.permute.xlu0 %1056
          %1058 = vrot.lane.b32.xlu0 %v958, 8
          %v1059 = vpop.permute.xlu0 %1058
          %1060 = vrot.lane.b32.xlu0 %v961, 8
          %v1061 = vpop.permute.xlu0 %1060
          %1062 = vrot.lane.b32.xlu0 %v965, 8
          %v1063 = vpop.permute.xlu0 %1062
          %1064 = vrot.lane.b32.xlu0 %v968, 8
          %v1065 = vpop.permute.xlu0 %1064
          %1066 = vrot.lane.b32.xlu0 %v972, 8
          %v1067 = vpop.permute.xlu0 %1066
          %1068 = vrot.lane.b32.xlu0 %v975, 8
          %v1069 = vpop.permute.xlu0 %1068
          %1070 = vrot.lane.b32.xlu0 %v979, 8
          %v1071 = vpop.permute.xlu0 %1070
          %1072 = vrot.lane.b32.xlu0 %v982, 8
          %v1073 = vpop.permute.xlu0 %1072
          %1074 = vrot.lane.b32.xlu0 %v986, 8
          %v1075 = vpop.permute.xlu0 %1074
          %1076 = vrot.lane.b32.xlu0 %v989, 8
          %v1077 = vpop.permute.xlu0 %1076
          %1078 = vrot.lane.b32.xlu0 %v993, 8
          %v1079 = vpop.permute.xlu0 %1078
          %1080 = vrot.lane.b32.xlu0 %v996, 8
          %v1081 = vpop.permute.xlu0 %1080
          %1082 = vrot.lane.b32.xlu0 %v1000, 8
          %v1083 = vpop.permute.xlu0 %1082
          %1084 = vrot.lane.b32.xlu0 %v1003, 8
          %v1085 = vpop.permute.xlu0 %1084
          %1086 = vrot.lane.b32.xlu0 %v1007, 8
          %v1087 = vpop.permute.xlu0 %1086
          %1088 = vrot.lane.b32.xlu0 %v1010, 8
          %v1089 = vpop.permute.xlu0 %1088
          %1090 = vrot.lane.b32.xlu0 %v1014, 8
          %v1091 = vpop.permute.xlu0 %1090
          %1092 = vrot.lane.b32.xlu0 %v1017, 8
          %v1093 = vpop.permute.xlu0 %1092
          %1094 = vrot.lane.b32.xlu0 %v1021, 8
          %v1095 = vpop.permute.xlu0 %1094
          %1096 = vrot.lane.b32.xlu0 %v1024, 8
          %v1097 = vpop.permute.xlu0 %1096
          %1098 = vrot.lane.b32.xlu0 %v1028, 8
          %v1099 = vpop.permute.xlu0 %1098
          %1100 = vrot.lane.b32.xlu0 %v1031, 8
          %v1101 = vpop.permute.xlu0 %1100
          %1102 = vrot.lane.b32.xlu0 %v1035, 8
          %v1103 = vpop.permute.xlu0 %1102
          %1104 = vrot.lane.b32.xlu0 %v1038, 8
          %v1105 = vpop.permute.xlu0 %1104
          %1106 = vrot.lane.b32.xlu0 %v1042, 8
          %v1107 = vpop.permute.xlu0 %1106
          %1108 = vrot.lane.b32.xlu0 %v1045, 8
          %v1109 = vpop.permute.xlu0 %1108
          %vm1142 = vcmask 93248
          %1143 = vst.msk [vmem:[#allocation2] sm:$0xf] %vm1142, %v1047
          %1144 = vst.msk [vmem:[#allocation2 + $0x4] sm:$0xf] %vm1142, %v1049
          %1145 = vst.msk [vmem:[#allocation2 + $0x8] sm:$0xf] %vm1142, %v1051
          %1146 = vst.msk [vmem:[#allocation2 + $0xc] sm:$0xf] %vm1142, %v1053
          %1147 = vst.msk [vmem:[#allocation2 + $0x10] sm:$0xf] %vm1142, %v1055
          %1148 = vst.msk [vmem:[#allocation2 + $0x14] sm:$0xf] %vm1142, %v1057
          %1149 = vst.msk [vmem:[#allocation2 + $0x18] sm:$0xf] %vm1142, %v1059
          %1150 = vst.msk [vmem:[#allocation2 + $0x1c] sm:$0xf] %vm1142, %v1061
          %1151 = vst.msk [vmem:[#allocation2 + $0x20] sm:$0xf] %vm1142, %v1063
          %1152 = vst.msk [vmem:[#allocation2 + $0x24] sm:$0xf] %vm1142, %v1065
          %1153 = vst.msk [vmem:[#allocation2 + $0x28] sm:$0xf] %vm1142, %v1067
          %1154 = vst.msk [vmem:[#allocation2 + $0x2c] sm:$0xf] %vm1142, %v1069
          %1155 = vst.msk [vmem:[#allocation2 + $0x30] sm:$0xf] %vm1142, %v1071
          %1156 = vst.msk [vmem:[#allocation2 + $0x34] sm:$0xf] %vm1142, %v1073
          %1157 = vst.msk [vmem:[#allocation2 + $0x38] sm:$0xf] %vm1142, %v1075
          %1158 = vst.msk [vmem:[#allocation2 + $0x3c] sm:$0xf] %vm1142, %v1077
          %1159 = vst.msk [vmem:[#allocation2 + $0x40] sm:$0xf] %vm1142, %v1079
          %1160 = vst.msk [vmem:[#allocation2 + $0x44] sm:$0xf] %vm1142, %v1081
          %1161 = vst.msk [vmem:[#allocation2 + $0x48] sm:$0xf] %vm1142, %v1083
          %1162 = vst.msk [vmem:[#allocation2 + $0x4c] sm:$0xf] %vm1142, %v1085
          %1163 = vst.msk [vmem:[#allocation2 + $0x50] sm:$0xf] %vm1142, %v1087
          %1164 = vst.msk [vmem:[#allocation2 + $0x54] sm:$0xf] %vm1142, %v1089
          %1165 = vst.msk [vmem:[#allocation2 + $0x58] sm:$0xf] %vm1142, %v1091
          %1166 = vst.msk [vmem:[#allocation2 + $0x5c] sm:$0xf] %vm1142, %v1093
          %1167 = vst.msk [vmem:[#allocation2 + $0x60] sm:$0xf] %vm1142, %v1095
          %1168 = vst.msk [vmem:[#allocation2 + $0x64] sm:$0xf] %vm1142, %v1097
          %1169 = vst.msk [vmem:[#allocation2 + $0x68] sm:$0xf] %vm1142, %v1099
          %1170 = vst.msk [vmem:[#allocation2 + $0x6c] sm:$0xf] %vm1142, %v1101
          %1171 = vst.msk [vmem:[#allocation2 + $0x70] sm:$0xf] %vm1142, %v1103
          %1172 = vst.msk [vmem:[#allocation2 + $0x74] sm:$0xf] %vm1142, %v1105
          %1173 = vst.msk [vmem:[#allocation2 + $0x78] sm:$0xf] %vm1142, %v1107
          %1174 = vst.msk [vmem:[#allocation2 + $0x7c] sm:$0xf] %vm1142, %v1109
          %1177 = vrot.lane.b32.xlu0 %v283, 12
          %v1178 = vpop.permute.xlu0 %1177
          %1179 = vrot.lane.b32.xlu0 %v284, 12
          %v1180 = vpop.permute.xlu0 %1179
          %1181 = vrot.lane.b32.xlu0 %v286, 12
          %v1182 = vpop.permute.xlu0 %1181
          %1183 = vrot.lane.b32.xlu0 %v287, 12
          %v1184 = vpop.permute.xlu0 %1183
          %1185 = vrot.lane.b32.xlu0 %v289, 12
          %v1186 = vpop.permute.xlu0 %1185
          %1187 = vrot.lane.b32.xlu0 %v290, 12
          %v1188 = vpop.permute.xlu0 %1187
          %1189 = vrot.lane.b32.xlu0 %v292, 12
          %v1190 = vpop.permute.xlu0 %1189
          %1191 = vrot.lane.b32.xlu0 %v293, 12
          %v1192 = vpop.permute.xlu0 %1191
          %1193 = vrot.lane.b32.xlu0 %v295, 12
          %v1194 = vpop.permute.xlu0 %1193
          %1195 = vrot.lane.b32.xlu0 %v296, 12
          %v1196 = vpop.permute.xlu0 %1195
          %1197 = vrot.lane.b32.xlu0 %v298, 12
          %v1198 = vpop.permute.xlu0 %1197
          %1199 = vrot.lane.b32.xlu0 %v299, 12
          %v1200 = vpop.permute.xlu0 %1199
          %1201 = vrot.lane.b32.xlu0 %v301, 12
          %v1202 = vpop.permute.xlu0 %1201
          %1203 = vrot.lane.b32.xlu0 %v302, 12
          %v1204 = vpop.permute.xlu0 %1203
          %1205 = vrot.lane.b32.xlu0 %v304, 12
          %v1206 = vpop.permute.xlu0 %1205
          %1207 = vrot.lane.b32.xlu0 %v305, 12
          %v1208 = vpop.permute.xlu0 %1207
          %1209 = vrot.lane.b32.xlu0 %v307, 12
          %v1210 = vpop.permute.xlu0 %1209
          %1211 = vrot.lane.b32.xlu0 %v308, 12
          %v1212 = vpop.permute.xlu0 %1211
          %1213 = vrot.lane.b32.xlu0 %v310, 12
          %v1214 = vpop.permute.xlu0 %1213
          %1215 = vrot.lane.b32.xlu0 %v311, 12
          %v1216 = vpop.permute.xlu0 %1215
          %1217 = vrot.lane.b32.xlu0 %v313, 12
          %v1218 = vpop.permute.xlu0 %1217
          %1219 = vrot.lane.b32.xlu0 %v314, 12
          %v1220 = vpop.permute.xlu0 %1219
          %1221 = vrot.lane.b32.xlu0 %v316, 12
          %v1222 = vpop.permute.xlu0 %1221
          %1223 = vrot.lane.b32.xlu0 %v317, 12
          %v1224 = vpop.permute.xlu0 %1223
          %1225 = vrot.lane.b32.xlu0 %v319, 12
          %v1226 = vpop.permute.xlu0 %1225
          %1227 = vrot.lane.b32.xlu0 %v320, 12
          %v1228 = vpop.permute.xlu0 %1227
          %1229 = vrot.lane.b32.xlu0 %v322, 12
          %v1230 = vpop.permute.xlu0 %1229
          %1231 = vrot.lane.b32.xlu0 %v323, 12
          %v1232 = vpop.permute.xlu0 %1231
          %1233 = vrot.lane.b32.xlu0 %v325, 12
          %v1234 = vpop.permute.xlu0 %1233
          %1235 = vrot.lane.b32.xlu0 %v326, 12
          %v1236 = vpop.permute.xlu0 %1235
          %1237 = vrot.lane.b32.xlu0 %v328, 12
          %v1238 = vpop.permute.xlu0 %1237
          %1239 = vrot.lane.b32.xlu0 %v329, 12
          %v1240 = vpop.permute.xlu0 %1239
          %vm1273 = vcmask 126048
          %1274 = vst.msk [vmem:[#allocation2] sm:$0xf] %vm1273, %v1178
          %1275 = vst.msk [vmem:[#allocation2 + $0x4] sm:$0xf] %vm1273, %v1180
          %1276 = vst.msk [vmem:[#allocation2 + $0x8] sm:$0xf] %vm1273, %v1182
          %1277 = vst.msk [vmem:[#allocation2 + $0xc] sm:$0xf] %vm1273, %v1184
          %1278 = vst.msk [vmem:[#allocation2 + $0x10] sm:$0xf] %vm1273, %v1186
          %1279 = vst.msk [vmem:[#allocation2 + $0x14] sm:$0xf] %vm1273, %v1188
          %1280 = vst.msk [vmem:[#allocation2 + $0x18] sm:$0xf] %vm1273, %v1190
          %1281 = vst.msk [vmem:[#allocation2 + $0x1c] sm:$0xf] %vm1273, %v1192
          %1282 = vst.msk [vmem:[#allocation2 + $0x20] sm:$0xf] %vm1273, %v1194
          %1283 = vst.msk [vmem:[#allocation2 + $0x24] sm:$0xf] %vm1273, %v1196
          %1284 = vst.msk [vmem:[#allocation2 + $0x28] sm:$0xf] %vm1273, %v1198
          %1285 = vst.msk [vmem:[#allocation2 + $0x2c] sm:$0xf] %vm1273, %v1200
          %1286 = vst.msk [vmem:[#allocation2 + $0x30] sm:$0xf] %vm1273, %v1202
          %1287 = vst.msk [vmem:[#allocation2 + $0x34] sm:$0xf] %vm1273, %v1204
          %1288 = vst.msk [vmem:[#allocation2 + $0x38] sm:$0xf] %vm1273, %v1206
          %1289 = vst.msk [vmem:[#allocation2 + $0x3c] sm:$0xf] %vm1273, %v1208
          %1290 = vst.msk [vmem:[#allocation2 + $0x40] sm:$0xf] %vm1273, %v1210
          %1291 = vst.msk [vmem:[#allocation2 + $0x44] sm:$0xf] %vm1273, %v1212
          %1292 = vst.msk [vmem:[#allocation2 + $0x48] sm:$0xf] %vm1273, %v1214
          %1293 = vst.msk [vmem:[#allocation2 + $0x4c] sm:$0xf] %vm1273, %v1216
          %1294 = vst.msk [vmem:[#allocation2 + $0x50] sm:$0xf] %vm1273, %v1218
          %1295 = vst.msk [vmem:[#allocation2 + $0x54] sm:$0xf] %vm1273, %v1220
          %1296 = vst.msk [vmem:[#allocation2 + $0x58] sm:$0xf] %vm1273, %v1222
          %1297 = vst.msk [vmem:[#allocation2 + $0x5c] sm:$0xf] %vm1273, %v1224
          %1298 = vst.msk [vmem:[#allocation2 + $0x60] sm:$0xf] %vm1273, %v1226
          %1299 = vst.msk [vmem:[#allocation2 + $0x64] sm:$0xf] %vm1273, %v1228
          %1300 = vst.msk [vmem:[#allocation2 + $0x68] sm:$0xf] %vm1273, %v1230
          %1301 = vst.msk [vmem:[#allocation2 + $0x6c] sm:$0xf] %vm1273, %v1232
          %1302 = vst.msk [vmem:[#allocation2 + $0x70] sm:$0xf] %vm1273, %v1234
          %1303 = vst.msk [vmem:[#allocation2 + $0x74] sm:$0xf] %vm1273, %v1236
          %1304 = vst.msk [vmem:[#allocation2 + $0x78] sm:$0xf] %vm1273, %v1238
          %1305 = vst.msk [vmem:[#allocation2 + $0x7c] sm:$0xf] %vm1273, %v1240
          %v1307 = vshrl.u32 %v328, 16
          %v1309 = vrot.slane %v1307, 4
          %v1310 = vshll.u32 %v328, 16
          %v1312 = vrot.slane %v1310, 5
          %v1313 = vor.u32 %v1309, %v1312
          %v1314 = vrot.slane %v1313, 4
          %v1316 = vshll.u32 %v329, 16
          %v1318 = vrot.slane %v1316, 5
          %v1319 = vsel %vm369, %v1314, %v1318
          %v1320 = vshrl.u32 %v329, 16
          %v1322 = vrot.slane %v1320, 4
          %v1323 = vor.u32 %v1322, %v1318
          %v1324 = vrot.slane %v1323, 4
          %v1326 = vshll.u32 %v330, 16
          %v1328 = vrot.slane %v1326, 5
          %v1329 = vsel %vm369, %v1324, %v1328
          %1330 = vrot.lane.b32.xlu0 %v407, 16
          %v1331 = vpop.permute.xlu0 %1330
          %1332 = vrot.lane.b32.xlu0 %v417, 16
          %v1333 = vpop.permute.xlu0 %1332
          %1334 = vrot.lane.b32.xlu0 %v431, 16
          %v1335 = vpop.permute.xlu0 %1334
          %1336 = vrot.lane.b32.xlu0 %v441, 16
          %v1337 = vpop.permute.xlu0 %1336
          %1338 = vrot.lane.b32.xlu0 %v455, 16
          %v1339 = vpop.permute.xlu0 %1338
          %1340 = vrot.lane.b32.xlu0 %v465, 16
          %v1341 = vpop.permute.xlu0 %1340
          %1342 = vrot.lane.b32.xlu0 %v479, 16
          %v1343 = vpop.permute.xlu0 %1342
          %1344 = vrot.lane.b32.xlu0 %v489, 16
          %v1345 = vpop.permute.xlu0 %1344
          %1346 = vrot.lane.b32.xlu0 %v503, 16
          %v1347 = vpop.permute.xlu0 %1346
          %1348 = vrot.lane.b32.xlu0 %v513, 16
          %v1349 = vpop.permute.xlu0 %1348
          %1350 = vrot.lane.b32.xlu0 %v527, 16
          %v1351 = vpop.permute.xlu0 %1350
          %1352 = vrot.lane.b32.xlu0 %v537, 16
          %v1353 = vpop.permute.xlu0 %1352
          %1354 = vrot.lane.b32.xlu0 %v551, 16
          %v1355 = vpop.permute.xlu0 %1354
          %1356 = vrot.lane.b32.xlu0 %v561, 16
          %v1357 = vpop.permute.xlu0 %1356
          %1358 = vrot.lane.b32.xlu0 %v575, 16
          %v1359 = vpop.permute.xlu0 %1358
          %1360 = vrot.lane.b32.xlu0 %v585, 16
          %v1361 = vpop.permute.xlu0 %1360
          %1362 = vrot.lane.b32.xlu0 %v599, 16
          %v1363 = vpop.permute.xlu0 %1362
          %1364 = vrot.lane.b32.xlu0 %v609, 16
          %v1365 = vpop.permute.xlu0 %1364
          %1366 = vrot.lane.b32.xlu0 %v623, 16
          %v1367 = vpop.permute.xlu0 %1366
          %1368 = vrot.lane.b32.xlu0 %v633, 16
          %v1369 = vpop.permute.xlu0 %1368
          %1370 = vrot.lane.b32.xlu0 %v647, 16
          %v1371 = vpop.permute.xlu0 %1370
          %1372 = vrot.lane.b32.xlu0 %v657, 16
          %v1373 = vpop.permute.xlu0 %1372
          %1374 = vrot.lane.b32.xlu0 %v671, 16
          %v1375 = vpop.permute.xlu0 %1374
          %1376 = vrot.lane.b32.xlu0 %v681, 16
          %v1377 = vpop.permute.xlu0 %1376
          %1378 = vrot.lane.b32.xlu0 %v695, 16
          %v1379 = vpop.permute.xlu0 %1378
          %1380 = vrot.lane.b32.xlu0 %v705, 16
          %v1381 = vpop.permute.xlu0 %1380
          %1382 = vrot.lane.b32.xlu0 %v719, 16
          %v1383 = vpop.permute.xlu0 %1382
          %1384 = vrot.lane.b32.xlu0 %v729, 16
          %v1385 = vpop.permute.xlu0 %1384
          %1386 = vrot.lane.b32.xlu0 %v743, 16
          %v1387 = vpop.permute.xlu0 %1386
          %1388 = vrot.lane.b32.xlu0 %v753, 16
          %v1389 = vpop.permute.xlu0 %1388
          %1390 = vrot.lane.b32.xlu0 %v1319, 16
          %v1391 = vpop.permute.xlu0 %1390
          %1392 = vrot.lane.b32.xlu0 %v1329, 16
          %v1393 = vpop.permute.xlu0 %1392
          %vm1426 = vcmask 158848
          %1427 = vst.msk [vmem:[#allocation2] sm:$0xf] %vm1426, %v1331
          %1428 = vst.msk [vmem:[#allocation2 + $0x4] sm:$0xf] %vm1426, %v1333
          %1429 = vst.msk [vmem:[#allocation2 + $0x8] sm:$0xf] %vm1426, %v1335
          %1430 = vst.msk [vmem:[#allocation2 + $0xc] sm:$0xf] %vm1426, %v1337
          %1431 = vst.msk [vmem:[#allocation2 + $0x10] sm:$0xf] %vm1426, %v1339
          %1432 = vst.msk [vmem:[#allocation2 + $0x14] sm:$0xf] %vm1426, %v1341
          %1433 = vst.msk [vmem:[#allocation2 + $0x18] sm:$0xf] %vm1426, %v1343
          %1434 = vst.msk [vmem:[#allocation2 + $0x1c] sm:$0xf] %vm1426, %v1345
          %1435 = vst.msk [vmem:[#allocation2 + $0x20] sm:$0xf] %vm1426, %v1347
          %1436 = vst.msk [vmem:[#allocation2 + $0x24] sm:$0xf] %vm1426, %v1349
          %1437 = vst.msk [vmem:[#allocation2 + $0x28] sm:$0xf] %vm1426, %v1351
          %1438 = vst.msk [vmem:[#allocation2 + $0x2c] sm:$0xf] %vm1426, %v1353
          %1439 = vst.msk [vmem:[#allocation2 + $0x30] sm:$0xf] %vm1426, %v1355
          %1440 = vst.msk [vmem:[#allocation2 + $0x34] sm:$0xf] %vm1426, %v1357
          %1441 = vst.msk [vmem:[#allocation2 + $0x38] sm:$0xf] %vm1426, %v1359
          %1442 = vst.msk [vmem:[#allocation2 + $0x3c] sm:$0xf] %vm1426, %v1361
          %1443 = vst.msk [vmem:[#allocation2 + $0x40] sm:$0xf] %vm1426, %v1363
          %1444 = vst.msk [vmem:[#allocation2 + $0x44] sm:$0xf] %vm1426, %v1365
          %1445 = vst.msk [vmem:[#allocation2 + $0x48] sm:$0xf] %vm1426, %v1367
          %1446 = vst.msk [vmem:[#allocation2 + $0x4c] sm:$0xf] %vm1426, %v1369
          %1447 = vst.msk [vmem:[#allocation2 + $0x50] sm:$0xf] %vm1426, %v1371
          %1448 = vst.msk [vmem:[#allocation2 + $0x54] sm:$0xf] %vm1426, %v1373
          %1449 = vst.msk [vmem:[#allocation2 + $0x58] sm:$0xf] %vm1426, %v1375
          %1450 = vst.msk [vmem:[#allocation2 + $0x5c] sm:$0xf] %vm1426, %v1377
          %1451 = vst.msk [vmem:[#allocation2 + $0x60] sm:$0xf] %vm1426, %v1379
          %1452 = vst.msk [vmem:[#allocation2 + $0x64] sm:$0xf] %vm1426, %v1381
          %1453 = vst.msk [vmem:[#allocation2 + $0x68] sm:$0xf] %vm1426, %v1383
          %1454 = vst.msk [vmem:[#allocation2 + $0x6c] sm:$0xf] %vm1426, %v1385
          %1455 = vst.msk [vmem:[#allocation2 + $0x70] sm:$0xf] %vm1426, %v1387
          %1456 = vst.msk [vmem:[#allocation2 + $0x74] sm:$0xf] %vm1426, %v1389
          %1457 = vst.msk [vmem:[#allocation2 + $0x78] sm:$0xf] %vm1426, %v1391
          %1458 = vst.msk [vmem:[#allocation2 + $0x7c] sm:$0xf] %vm1426, %v1393
          %v1460 = vrot.slane %v328, 5
          %v1461 = vrot.slane %v1460, 4
          %v1462 = vrot.slane %v329, 5
          %v1463 = vsel %vm933, %v1461, %v1462
          %v1464 = vrot.slane %v1462, 4
          %v1465 = vrot.slane %v330, 5
          %v1466 = vsel %vm933, %v1464, %v1465
          %1467 = vrot.lane.b32.xlu0 %v944, 20
          %v1468 = vpop.permute.xlu0 %1467
          %1469 = vrot.lane.b32.xlu0 %v947, 20
          %v1470 = vpop.permute.xlu0 %1469
          %1471 = vrot.lane.b32.xlu0 %v951, 20
          %v1472 = vpop.permute.xlu0 %1471
          %1473 = vrot.lane.b32.xlu0 %v954, 20
          %v1474 = vpop.permute.xlu0 %1473
          %1475 = vrot.lane.b32.xlu0 %v958, 20
          %v1476 = vpop.permute.xlu0 %1475
          %1477 = vrot.lane.b32.xlu0 %v961, 20
          %v1478 = vpop.permute.xlu0 %1477
          %1479 = vrot.lane.b32.xlu0 %v965, 20
          %v1480 = vpop.permute.xlu0 %1479
          %1481 = vrot.lane.b32.xlu0 %v968, 20
          %v1482 = vpop.permute.xlu0 %1481
          %1483 = vrot.lane.b32.xlu0 %v972, 20
          %v1484 = vpop.permute.xlu0 %1483
          %1485 = vrot.lane.b32.xlu0 %v975, 20
          %v1486 = vpop.permute.xlu0 %1485
          %1487 = vrot.lane.b32.xlu0 %v979, 20
          %v1488 = vpop.permute.xlu0 %1487
          %1489 = vrot.lane.b32.xlu0 %v982, 20
          %v1490 = vpop.permute.xlu0 %1489
          %1491 = vrot.lane.b32.xlu0 %v986, 20
          %v1492 = vpop.permute.xlu0 %1491
          %1493 = vrot.lane.b32.xlu0 %v989, 20
          %v1494 = vpop.permute.xlu0 %1493
          %1495 = vrot.lane.b32.xlu0 %v993, 20
          %v1496 = vpop.permute.xlu0 %1495
          %1497 = vrot.lane.b32.xlu0 %v996, 20
          %v1498 = vpop.permute.xlu0 %1497
          %1499 = vrot.lane.b32.xlu0 %v1000, 20
          %v1500 = vpop.permute.xlu0 %1499
          %1501 = vrot.lane.b32.xlu0 %v1003, 20
          %v1502 = vpop.permute.xlu0 %1501
          %1503 = vrot.lane.b32.xlu0 %v1007, 20
          %v1504 = vpop.permute.xlu0 %1503
          %1505 = vrot.lane.b32.xlu0 %v1010, 20
          %v1506 = vpop.permute.xlu0 %1505
          %1507 = vrot.lane.b32.xlu0 %v1014, 20
          %v1508 = vpop.permute.xlu0 %1507
          %1509 = vrot.lane.b32.xlu0 %v1017, 20
          %v1510 = vpop.permute.xlu0 %1509
          %1511 = vrot.lane.b32.xlu0 %v1021, 20
          %v1512 = vpop.permute.xlu0 %1511
          %1513 = vrot.lane.b32.xlu0 %v1024, 20
          %v1514 = vpop.permute.xlu0 %1513
          %1515 = vrot.lane.b32.xlu0 %v1028, 20
          %v1516 = vpop.permute.xlu0 %1515
          %1517 = vrot.lane.b32.xlu0 %v1031, 20
          %v1518 = vpop.permute.xlu0 %1517
          %1519 = vrot.lane.b32.xlu0 %v1035, 20
          %v1520 = vpop.permute.xlu0 %1519
          %1521 = vrot.lane.b32.xlu0 %v1038, 20
          %v1522 = vpop.permute.xlu0 %1521
          %1523 = vrot.lane.b32.xlu0 %v1042, 20
          %v1524 = vpop.permute.xlu0 %1523
          %1525 = vrot.lane.b32.xlu0 %v1045, 20
          %v1526 = vpop.permute.xlu0 %1525
          %1527 = vrot.lane.b32.xlu0 %v1463, 20
          %v1528 = vpop.permute.xlu0 %1527
          %1529 = vrot.lane.b32.xlu0 %v1466, 20
          %v1530 = vpop.permute.xlu0 %1529
          %vm1563 = vcmask 191648
          %1564 = vst.msk [vmem:[#allocation2] sm:$0xf] %vm1563, %v1468
          %1565 = vst.msk [vmem:[#allocation2 + $0x4] sm:$0xf] %vm1563, %v1470
          %1566 = vst.msk [vmem:[#allocation2 + $0x8] sm:$0xf] %vm1563, %v1472
          %1567 = vst.msk [vmem:[#allocation2 + $0xc] sm:$0xf] %vm1563, %v1474
          %1568 = vst.msk [vmem:[#allocation2 + $0x10] sm:$0xf] %vm1563, %v1476
          %1569 = vst.msk [vmem:[#allocation2 + $0x14] sm:$0xf] %vm1563, %v1478
          %1570 = vst.msk [vmem:[#allocation2 + $0x18] sm:$0xf] %vm1563, %v1480
          %1571 = vst.msk [vmem:[#allocation2 + $0x1c] sm:$0xf] %vm1563, %v1482
          %1572 = vst.msk [vmem:[#allocation2 + $0x20] sm:$0xf] %vm1563, %v1484
          %1573 = vst.msk [vmem:[#allocation2 + $0x24] sm:$0xf] %vm1563, %v1486
          %1574 = vst.msk [vmem:[#allocation2 + $0x28] sm:$0xf] %vm1563, %v1488
          %1575 = vst.msk [vmem:[#allocation2 + $0x2c] sm:$0xf] %vm1563, %v1490
          %1576 = vst.msk [vmem:[#allocation2 + $0x30] sm:$0xf] %vm1563, %v1492
          %1577 = vst.msk [vmem:[#allocation2 + $0x34] sm:$0xf] %vm1563, %v1494
          %1578 = vst.msk [vmem:[#allocation2 + $0x38] sm:$0xf] %vm1563, %v1496
          %1579 = vst.msk [vmem:[#allocation2 + $0x3c] sm:$0xf] %vm1563, %v1498
          %1580 = vst.msk [vmem:[#allocation2 + $0x40] sm:$0xf] %vm1563, %v1500
          %1581 = vst.msk [vmem:[#allocation2 + $0x44] sm:$0xf] %vm1563, %v1502
          %1582 = vst.msk [vmem:[#allocation2 + $0x48] sm:$0xf] %vm1563, %v1504
          %1583 = vst.msk [vmem:[#allocation2 + $0x4c] sm:$0xf] %vm1563, %v1506
          %1584 = vst.msk [vmem:[#allocation2 + $0x50] sm:$0xf] %vm1563, %v1508
          %1585 = vst.msk [vmem:[#allocation2 + $0x54] sm:$0xf] %vm1563, %v1510
          %1586 = vst.msk [vmem:[#allocation2 + $0x58] sm:$0xf] %vm1563, %v1512
          %1587 = vst.msk [vmem:[#allocation2 + $0x5c] sm:$0xf] %vm1563, %v1514
          %1588 = vst.msk [vmem:[#allocation2 + $0x60] sm:$0xf] %vm1563, %v1516
          %1589 = vst.msk [vmem:[#allocation2 + $0x64] sm:$0xf] %vm1563, %v1518
          %1590 = vst.msk [vmem:[#allocation2 + $0x68] sm:$0xf] %vm1563, %v1520
          %1591 = vst.msk [vmem:[#allocation2 + $0x6c] sm:$0xf] %vm1563, %v1522
          %1592 = vst.msk [vmem:[#allocation2 + $0x70] sm:$0xf] %vm1563, %v1524
          %1593 = vst.msk [vmem:[#allocation2 + $0x74] sm:$0xf] %vm1563, %v1526
          %1594 = vst.msk [vmem:[#allocation2 + $0x78] sm:$0xf] %vm1563, %v1528
          %1595 = vst.msk [vmem:[#allocation2 + $0x7c] sm:$0xf] %vm1563, %v1530
          %1598 = vrot.lane.b32.xlu0 %v286, 24
          %v1599 = vpop.permute.xlu0 %1598
          %1600 = vrot.lane.b32.xlu0 %v287, 24
          %v1601 = vpop.permute.xlu0 %1600
          %1602 = vrot.lane.b32.xlu0 %v289, 24
          %v1603 = vpop.permute.xlu0 %1602
          %1604 = vrot.lane.b32.xlu0 %v290, 24
          %v1605 = vpop.permute.xlu0 %1604
          %1606 = vrot.lane.b32.xlu0 %v292, 24
          %v1607 = vpop.permute.xlu0 %1606
          %1608 = vrot.lane.b32.xlu0 %v293, 24
          %v1609 = vpop.permute.xlu0 %1608
          %1610 = vrot.lane.b32.xlu0 %v295, 24
          %v1611 = vpop.permute.xlu0 %1610
          %1612 = vrot.lane.b32.xlu0 %v296, 24
          %v1613 = vpop.permute.xlu0 %1612
          %1614 = vrot.lane.b32.xlu0 %v298, 24
          %v1615 = vpop.permute.xlu0 %1614
          %1616 = vrot.lane.b32.xlu0 %v299, 24
          %v1617 = vpop.permute.xlu0 %1616
          %1618 = vrot.lane.b32.xlu0 %v301, 24
          %v1619 = vpop.permute.xlu0 %1618
          %1620 = vrot.lane.b32.xlu0 %v302, 24
          %v1621 = vpop.permute.xlu0 %1620
          %1622 = vrot.lane.b32.xlu0 %v304, 24
          %v1623 = vpop.permute.xlu0 %1622
          %1624 = vrot.lane.b32.xlu0 %v305, 24
          %v1625 = vpop.permute.xlu0 %1624
          %1626 = vrot.lane.b32.xlu0 %v307, 24
          %v1627 = vpop.permute.xlu0 %1626
          %1628 = vrot.lane.b32.xlu0 %v308, 24
          %v1629 = vpop.permute.xlu0 %1628
          %1630 = vrot.lane.b32.xlu0 %v310, 24
          %v1631 = vpop.permute.xlu0 %1630
          %1632 = vrot.lane.b32.xlu0 %v311, 24
          %v1633 = vpop.permute.xlu0 %1632
          %1634 = vrot.lane.b32.xlu0 %v313, 24
          %v1635 = vpop.permute.xlu0 %1634
          %1636 = vrot.lane.b32.xlu0 %v314, 24
          %v1637 = vpop.permute.xlu0 %1636
          %1638 = vrot.lane.b32.xlu0 %v316, 24
          %v1639 = vpop.permute.xlu0 %1638
          %1640 = vrot.lane.b32.xlu0 %v317, 24
          %v1641 = vpop.permute.xlu0 %1640
          %1642 = vrot.lane.b32.xlu0 %v319, 24
          %v1643 = vpop.permute.xlu0 %1642
          %1644 = vrot.lane.b32.xlu0 %v320, 24
          %v1645 = vpop.permute.xlu0 %1644
          %1646 = vrot.lane.b32.xlu0 %v322, 24
          %v1647 = vpop.permute.xlu0 %1646
          %1648 = vrot.lane.b32.xlu0 %v323, 24
          %v1649 = vpop.permute.xlu0 %1648
          %1650 = vrot.lane.b32.xlu0 %v325, 24
          %v1651 = vpop.permute.xlu0 %1650
          %1652 = vrot.lane.b32.xlu0 %v326, 24
          %v1653 = vpop.permute.xlu0 %1652
          %1654 = vrot.lane.b32.xlu0 %v328, 24
          %v1655 = vpop.permute.xlu0 %1654
          %1656 = vrot.lane.b32.xlu0 %v329, 24
          %v1657 = vpop.permute.xlu0 %1656
          %1658 = vrot.lane.b32.xlu0 %v331, 24
          %v1659 = vpop.permute.xlu0 %1658
          %1660 = vrot.lane.b32.xlu0 %v332, 24
          %v1661 = vpop.permute.xlu0 %1660
          %vm1694 = vcmask 224448
          %1695 = vst.msk [vmem:[#allocation2] sm:$0xf] %vm1694, %v1599
          %1696 = vst.msk [vmem:[#allocation2 + $0x4] sm:$0xf] %vm1694, %v1601
          %1697 = vst.msk [vmem:[#allocation2 + $0x8] sm:$0xf] %vm1694, %v1603
          %1698 = vst.msk [vmem:[#allocation2 + $0xc] sm:$0xf] %vm1694, %v1605
          %1699 = vst.msk [vmem:[#allocation2 + $0x10] sm:$0xf] %vm1694, %v1607
          %1700 = vst.msk [vmem:[#allocation2 + $0x14] sm:$0xf] %vm1694, %v1609
          %1701 = vst.msk [vmem:[#allocation2 + $0x18] sm:$0xf] %vm1694, %v1611
          %1702 = vst.msk [vmem:[#allocation2 + $0x1c] sm:$0xf] %vm1694, %v1613
          %1703 = vst.msk [vmem:[#allocation2 + $0x20] sm:$0xf] %vm1694, %v1615
          %1704 = vst.msk [vmem:[#allocation2 + $0x24] sm:$0xf] %vm1694, %v1617
          %1705 = vst.msk [vmem:[#allocation2 + $0x28] sm:$0xf] %vm1694, %v1619
          %1706 = vst.msk [vmem:[#allocation2 + $0x2c] sm:$0xf] %vm1694, %v1621
          %1707 = vst.msk [vmem:[#allocation2 + $0x30] sm:$0xf] %vm1694, %v1623
          %1708 = vst.msk [vmem:[#allocation2 + $0x34] sm:$0xf] %vm1694, %v1625
          %1709 = vst.msk [vmem:[#allocation2 + $0x38] sm:$0xf] %vm1694, %v1627
          %1710 = vst.msk [vmem:[#allocation2 + $0x3c] sm:$0xf] %vm1694, %v1629
          %1711 = vst.msk [vmem:[#allocation2 + $0x40] sm:$0xf] %vm1694, %v1631
          %1712 = vst.msk [vmem:[#allocation2 + $0x44] sm:$0xf] %vm1694, %v1633
          %1713 = vst.msk [vmem:[#allocation2 + $0x48] sm:$0xf] %vm1694, %v1635
          %1714 = vst.msk [vmem:[#allocation2 + $0x4c] sm:$0xf] %vm1694, %v1637
          %1715 = vst.msk [vmem:[#allocation2 + $0x50] sm:$0xf] %vm1694, %v1639
          %1716 = vst.msk [vmem:[#allocation2 + $0x54] sm:$0xf] %vm1694, %v1641
          %1717 = vst.msk [vmem:[#allocation2 + $0x58] sm:$0xf] %vm1694, %v1643
          %1718 = vst.msk [vmem:[#allocation2 + $0x5c] sm:$0xf] %vm1694, %v1645
          %1719 = vst.msk [vmem:[#allocation2 + $0x60] sm:$0xf] %vm1694, %v1647
          %1720 = vst.msk [vmem:[#allocation2 + $0x64] sm:$0xf] %vm1694, %v1649
          %1721 = vst.msk [vmem:[#allocation2 + $0x68] sm:$0xf] %vm1694, %v1651
          %1722 = vst.msk [vmem:[#allocation2 + $0x6c] sm:$0xf] %vm1694, %v1653
          %1723 = vst.msk [vmem:[#allocation2 + $0x70] sm:$0xf] %vm1694, %v1655
          %1724 = vst.msk [vmem:[#allocation2 + $0x74] sm:$0xf] %vm1694, %v1657
          %1725 = vst.msk [vmem:[#allocation2 + $0x78] sm:$0xf] %vm1694, %v1659
          %1726 = vst.msk [vmem:[#allocation2 + $0x7c] sm:$0xf] %vm1694, %v1661
          %v1728 = vshrl.u32 %v331, 16
          %v1730 = vrot.slane %v1728, 4
          %v1731 = vshll.u32 %v331, 16
          %v1733 = vrot.slane %v1731, 5
          %v1734 = vor.u32 %v1730, %v1733
          %v1735 = vrot.slane %v1734, 4
          %v1737 = vshll.u32 %v332, 16
          %v1739 = vrot.slane %v1737, 5
          %v1740 = vsel %vm369, %v1735, %v1739
          %v1741 = vshrl.u32 %v332, 16
          %v1743 = vrot.slane %v1741, 4
          %v1744 = vor.u32 %v1743, %v1739
          %v1745 = vrot.slane %v1744, 4
          %v1747 = vshll.u32 %v333, 16
          %v1749 = vrot.slane %v1747, 5
          %v1750 = vsel %vm369, %v1745, %v1749
          %1751 = vrot.lane.b32.xlu0 %v431, 28
          %v1752 = vpop.permute.xlu0 %1751
          %1753 = vrot.lane.b32.xlu0 %v441, 28
          %v1754 = vpop.permute.xlu0 %1753
          %1755 = vrot.lane.b32.xlu0 %v455, 28
          %v1756 = vpop.permute.xlu0 %1755
          %1757 = vrot.lane.b32.xlu0 %v465, 28
          %v1758 = vpop.permute.xlu0 %1757
          %1759 = vrot.lane.b32.xlu0 %v479, 28
          %v1760 = vpop.permute.xlu0 %1759
          %1761 = vrot.lane.b32.xlu0 %v489, 28
          %v1762 = vpop.permute.xlu0 %1761
          %1763 = vrot.lane.b32.xlu0 %v503, 28
          %v1764 = vpop.permute.xlu0 %1763
          %1765 = vrot.lane.b32.xlu0 %v513, 28
          %v1766 = vpop.permute.xlu0 %1765
          %1767 = vrot.lane.b32.xlu0 %v527, 28
          %v1768 = vpop.permute.xlu0 %1767
          %1769 = vrot.lane.b32.xlu0 %v537, 28
          %v1770 = vpop.permute.xlu0 %1769
          %1771 = vrot.lane.b32.xlu0 %v551, 28
          %v1772 = vpop.permute.xlu0 %1771
          %1773 = vrot.lane.b32.xlu0 %v561, 28
          %v1774 = vpop.permute.xlu0 %1773
          %1775 = vrot.lane.b32.xlu0 %v575, 28
          %v1776 = vpop.permute.xlu0 %1775
          %1777 = vrot.lane.b32.xlu0 %v585, 28
          %v1778 = vpop.permute.xlu0 %1777
          %1779 = vrot.lane.b32.xlu0 %v599, 28
          %v1780 = vpop.permute.xlu0 %1779
          %1781 = vrot.lane.b32.xlu0 %v609, 28
          %v1782 = vpop.permute.xlu0 %1781
          %1783 = vrot.lane.b32.xlu0 %v623, 28
          %v1784 = vpop.permute.xlu0 %1783
          %1785 = vrot.lane.b32.xlu0 %v633, 28
          %v1786 = vpop.permute.xlu0 %1785
          %1787 = vrot.lane.b32.xlu0 %v647, 28
          %v1788 = vpop.permute.xlu0 %1787
          %1789 = vrot.lane.b32.xlu0 %v657, 28
          %v1790 = vpop.permute.xlu0 %1789
          %1791 = vrot.lane.b32.xlu0 %v671, 28
          %v1792 = vpop.permute.xlu0 %1791
          %1793 = vrot.lane.b32.xlu0 %v681, 28
          %v1794 = vpop.permute.xlu0 %1793
          %1795 = vrot.lane.b32.xlu0 %v695, 28
          %v1796 = vpop.permute.xlu0 %1795
          %1797 = vrot.lane.b32.xlu0 %v705, 28
          %v1798 = vpop.permute.xlu0 %1797
          %1799 = vrot.lane.b32.xlu0 %v719, 28
          %v1800 = vpop.permute.xlu0 %1799
          %1801 = vrot.lane.b32.xlu0 %v729, 28
          %v1802 = vpop.permute.xlu0 %1801
          %1803 = vrot.lane.b32.xlu0 %v743, 28
          %v1804 = vpop.permute.xlu0 %1803
          %1805 = vrot.lane.b32.xlu0 %v753, 28
          %v1806 = vpop.permute.xlu0 %1805
          %1807 = vrot.lane.b32.xlu0 %v1319, 28
          %v1808 = vpop.permute.xlu0 %1807
          %1809 = vrot.lane.b32.xlu0 %v1329, 28
          %v1810 = vpop.permute.xlu0 %1809
          %1811 = vrot.lane.b32.xlu0 %v1740, 28
          %v1812 = vpop.permute.xlu0 %1811
          %1813 = vrot.lane.b32.xlu0 %v1750, 28
          %v1814 = vpop.permute.xlu0 %1813
          %vm1847 = vcmask 257248
          %1848 = vst.msk [vmem:[#allocation2] sm:$0xf] %vm1847, %v1752
          %1849 = vst.msk [vmem:[#allocation2 + $0x4] sm:$0xf] %vm1847, %v1754
          %1850 = vst.msk [vmem:[#allocation2 + $0x8] sm:$0xf] %vm1847, %v1756
          %1851 = vst.msk [vmem:[#allocation2 + $0xc] sm:$0xf] %vm1847, %v1758
          %1852 = vst.msk [vmem:[#allocation2 + $0x10] sm:$0xf] %vm1847, %v1760
          %1853 = vst.msk [vmem:[#allocation2 + $0x14] sm:$0xf] %vm1847, %v1762
          %1854 = vst.msk [vmem:[#allocation2 + $0x18] sm:$0xf] %vm1847, %v1764
          %1855 = vst.msk [vmem:[#allocation2 + $0x1c] sm:$0xf] %vm1847, %v1766
          %1856 = vst.msk [vmem:[#allocation2 + $0x20] sm:$0xf] %vm1847, %v1768
          %1857 = vst.msk [vmem:[#allocation2 + $0x24] sm:$0xf] %vm1847, %v1770
          %1858 = vst.msk [vmem:[#allocation2 + $0x28] sm:$0xf] %vm1847, %v1772
          %1859 = vst.msk [vmem:[#allocation2 + $0x2c] sm:$0xf] %vm1847, %v1774
          %1860 = vst.msk [vmem:[#allocation2 + $0x30] sm:$0xf] %vm1847, %v1776
          %1861 = vst.msk [vmem:[#allocation2 + $0x34] sm:$0xf] %vm1847, %v1778
          %1862 = vst.msk [vmem:[#allocation2 + $0x38] sm:$0xf] %vm1847, %v1780
          %1863 = vst.msk [vmem:[#allocation2 + $0x3c] sm:$0xf] %vm1847, %v1782
          %1864 = vst.msk [vmem:[#allocation2 + $0x40] sm:$0xf] %vm1847, %v1784
          %1865 = vst.msk [vmem:[#allocation2 + $0x44] sm:$0xf] %vm1847, %v1786
          %1866 = vst.msk [vmem:[#allocation2 + $0x48] sm:$0xf] %vm1847, %v1788
          %1867 = vst.msk [vmem:[#allocation2 + $0x4c] sm:$0xf] %vm1847, %v1790
          %1868 = vst.msk [vmem:[#allocation2 + $0x50] sm:$0xf] %vm1847, %v1792
          %1869 = vst.msk [vmem:[#allocation2 + $0x54] sm:$0xf] %vm1847, %v1794
          %1870 = vst.msk [vmem:[#allocation2 + $0x58] sm:$0xf] %vm1847, %v1796
          %1871 = vst.msk [vmem:[#allocation2 + $0x5c] sm:$0xf] %vm1847, %v1798
          %1872 = vst.msk [vmem:[#allocation2 + $0x60] sm:$0xf] %vm1847, %v1800
          %1873 = vst.msk [vmem:[#allocation2 + $0x64] sm:$0xf] %vm1847, %v1802
          %1874 = vst.msk [vmem:[#allocation2 + $0x68] sm:$0xf] %vm1847, %v1804
          %1875 = vst.msk [vmem:[#allocation2 + $0x6c] sm:$0xf] %vm1847, %v1806
          %1876 = vst.msk [vmem:[#allocation2 + $0x70] sm:$0xf] %vm1847, %v1808
          %1877 = vst.msk [vmem:[#allocation2 + $0x74] sm:$0xf] %vm1847, %v1810
          %1878 = vst.msk [vmem:[#allocation2 + $0x78] sm:$0xf] %vm1847, %v1812
          %1879 = vst.msk [vmem:[#allocation2 + $0x7c] sm:$0xf] %vm1847, %v1814
          %v1881 = vrot.slane %v331, 5
          %v1882 = vrot.slane %v1881, 4
          %v1883 = vrot.slane %v332, 5
          %v1884 = vsel %vm933, %v1882, %v1883
          %v1885 = vrot.slane %v1883, 4
          %v1886 = vrot.slane %v333, 5
          %v1887 = vsel %vm933, %v1885, %v1886
          %1888 = vrot.lane.b32.xlu0 %v951, 32
          %v1889 = vpop.permute.xlu0 %1888
          %1890 = vrot.lane.b32.xlu0 %v954, 32
          %v1891 = vpop.permute.xlu0 %1890
          %1892 = vrot.lane.b32.xlu0 %v958, 32
          %v1893 = vpop.permute.xlu0 %1892
          %1894 = vrot.lane.b32.xlu0 %v961, 32
          %v1895 = vpop.permute.xlu0 %1894
          %1896 = vrot.lane.b32.xlu0 %v965, 32
          %v1897 = vpop.permute.xlu0 %1896
          %1898 = vrot.lane.b32.xlu0 %v968, 32
          %v1899 = vpop.permute.xlu0 %1898
          %1900 = vrot.lane.b32.xlu0 %v972, 32
          %v1901 = vpop.permute.xlu0 %1900
          %1902 = vrot.lane.b32.xlu0 %v975, 32
          %v1903 = vpop.permute.xlu0 %1902
          %1904 = vrot.lane.b32.xlu0 %v979, 32
          %v1905 = vpop.permute.xlu0 %1904
          %1906 = vrot.lane.b32.xlu0 %v982, 32
          %v1907 = vpop.permute.xlu0 %1906
          %1908 = vrot.lane.b32.xlu0 %v986, 32
          %v1909 = vpop.permute.xlu0 %1908
          %1910 = vrot.lane.b32.xlu0 %v989, 32
          %v1911 = vpop.permute.xlu0 %1910
          %1912 = vrot.lane.b32.xlu0 %v993, 32
          %v1913 = vpop.permute.xlu0 %1912
          %1914 = vrot.lane.b32.xlu0 %v996, 32
          %v1915 = vpop.permute.xlu0 %1914
          %1916 = vrot.lane.b32.xlu0 %v1000, 32
          %v1917 = vpop.permute.xlu0 %1916
          %1918 = vrot.lane.b32.xlu0 %v1003, 32
          %v1919 = vpop.permute.xlu0 %1918
          %1920 = vrot.lane.b32.xlu0 %v1007, 32
          %v1921 = vpop.permute.xlu0 %1920
          %1922 = vrot.lane.b32.xlu0 %v1010, 32
          %v1923 = vpop.permute.xlu0 %1922
          %1924 = vrot.lane.b32.xlu0 %v1014, 32
          %v1925 = vpop.permute.xlu0 %1924
          %1926 = vrot.lane.b32.xlu0 %v1017, 32
          %v1927 = vpop.permute.xlu0 %1926
          %1928 = vrot.lane.b32.xlu0 %v1021, 32
          %v1929 = vpop.permute.xlu0 %1928
          %1930 = vrot.lane.b32.xlu0 %v1024, 32
          %v1931 = vpop.permute.xlu0 %1930
          %1932 = vrot.lane.b32.xlu0 %v1028, 32
          %v1933 = vpop.permute.xlu0 %1932
          %1934 = vrot.lane.b32.xlu0 %v1031, 32
          %v1935 = vpop.permute.xlu0 %1934
          %1936 = vrot.lane.b32.xlu0 %v1035, 32
          %v1937 = vpop.permute.xlu0 %1936
          %1938 = vrot.lane.b32.xlu0 %v1038, 32
          %v1939 = vpop.permute.xlu0 %1938
          %1940 = vrot.lane.b32.xlu0 %v1042, 32
          %v1941 = vpop.permute.xlu0 %1940
          %1942 = vrot.lane.b32.xlu0 %v1045, 32
          %v1943 = vpop.permute.xlu0 %1942
          %1944 = vrot.lane.b32.xlu0 %v1463, 32
          %v1945 = vpop.permute.xlu0 %1944
          %1946 = vrot.lane.b32.xlu0 %v1466, 32
          %v1947 = vpop.permute.xlu0 %1946
          %1948 = vrot.lane.b32.xlu0 %v1884, 32
          %v1949 = vpop.permute.xlu0 %1948
          %1950 = vrot.lane.b32.xlu0 %v1887, 32
          %v1951 = vpop.permute.xlu0 %1950
          %vm1984 = vcmask 290048
          %1985 = vst.msk [vmem:[#allocation2] sm:$0xf] %vm1984, %v1889
          %1986 = vst.msk [vmem:[#allocation2 + $0x4] sm:$0xf] %vm1984, %v1891
          %1987 = vst.msk [vmem:[#allocation2 + $0x8] sm:$0xf] %vm1984, %v1893
          %1988 = vst.msk [vmem:[#allocation2 + $0xc] sm:$0xf] %vm1984, %v1895
          %1989 = vst.msk [vmem:[#allocation2 + $0x10] sm:$0xf] %vm1984, %v1897
          %1990 = vst.msk [vmem:[#allocation2 + $0x14] sm:$0xf] %vm1984, %v1899
          %1991 = vst.msk [vmem:[#allocation2 + $0x18] sm:$0xf] %vm1984, %v1901
          %1992 = vst.msk [vmem:[#allocation2 + $0x1c] sm:$0xf] %vm1984, %v1903
          %1993 = vst.msk [vmem:[#allocation2 + $0x20] sm:$0xf] %vm1984, %v1905
          %1994 = vst.msk [vmem:[#allocation2 + $0x24] sm:$0xf] %vm1984, %v1907
          %1995 = vst.msk [vmem:[#allocation2 + $0x28] sm:$0xf] %vm1984, %v1909
          %1996 = vst.msk [vmem:[#allocation2 + $0x2c] sm:$0xf] %vm1984, %v1911
          %1997 = vst.msk [vmem:[#allocation2 + $0x30] sm:$0xf] %vm1984, %v1913
          %1998 = vst.msk [vmem:[#allocation2 + $0x34] sm:$0xf] %vm1984, %v1915
          %1999 = vst.msk [vmem:[#allocation2 + $0x38] sm:$0xf] %vm1984, %v1917
          %2000 = vst.msk [vmem:[#allocation2 + $0x3c] sm:$0xf] %vm1984, %v1919
          %2001 = vst.msk [vmem:[#allocation2 + $0x40] sm:$0xf] %vm1984, %v1921
          %2002 = vst.msk [vmem:[#allocation2 + $0x44] sm:$0xf] %vm1984, %v1923
          %2003 = vst.msk [vmem:[#allocation2 + $0x48] sm:$0xf] %vm1984, %v1925
          %2004 = vst.msk [vmem:[#allocation2 + $0x4c] sm:$0xf] %vm1984, %v1927
          %2005 = vst.msk [vmem:[#allocation2 + $0x50] sm:$0xf] %vm1984, %v1929
          %2006 = vst.msk [vmem:[#allocation2 + $0x54] sm:$0xf] %vm1984, %v1931
          %2007 = vst.msk [vmem:[#allocation2 + $0x58] sm:$0xf] %vm1984, %v1933
          %2008 = vst.msk [vmem:[#allocation2 + $0x5c] sm:$0xf] %vm1984, %v1935
          %2009 = vst.msk [vmem:[#allocation2 + $0x60] sm:$0xf] %vm1984, %v1937
          %2010 = vst.msk [vmem:[#allocation2 + $0x64] sm:$0xf] %vm1984, %v1939
          %2011 = vst.msk [vmem:[#allocation2 + $0x68] sm:$0xf] %vm1984, %v1941
          %2012 = vst.msk [vmem:[#allocation2 + $0x6c] sm:$0xf] %vm1984, %v1943
          %2013 = vst.msk [vmem:[#allocation2 + $0x70] sm:$0xf] %vm1984, %v1945
          %2014 = vst.msk [vmem:[#allocation2 + $0x74] sm:$0xf] %vm1984, %v1947
          %2015 = vst.msk [vmem:[#allocation2 + $0x78] sm:$0xf] %vm1984, %v1949
          %2016 = vst.msk [vmem:[#allocation2 + $0x7c] sm:$0xf] %vm1984, %v1951
        $region40: #{tpu_custom_call.1} parent=35 // pred_fallthru
          _
        %v2017 = vld [vmem:[#allocation2] sm:$0xf]
        %v2018 = vld [vmem:[#allocation2 + $0x4] sm:$0xf]
        %v2019 = vld [vmem:[#allocation2 + $0x8] sm:$0xf]
        %v2020 = vld [vmem:[#allocation2 + $0xc] sm:$0xf]
        %v2021 = vld [vmem:[#allocation2 + $0x10] sm:$0xf]
        %v2022 = vld [vmem:[#allocation2 + $0x14] sm:$0xf]
        %v2023 = vld [vmem:[#allocation2 + $0x18] sm:$0xf]
        %v2024 = vld [vmem:[#allocation2 + $0x1c] sm:$0xf]
        %v2025 = vld [vmem:[#allocation2 + $0x20] sm:$0xf]
        %v2026 = vld [vmem:[#allocation2 + $0x24] sm:$0xf]
        %v2027 = vld [vmem:[#allocation2 + $0x28] sm:$0xf]
        %v2028 = vld [vmem:[#allocation2 + $0x2c] sm:$0xf]
        %v2029 = vld [vmem:[#allocation2 + $0x30] sm:$0xf]
        %v2030 = vld [vmem:[#allocation2 + $0x34] sm:$0xf]
        %v2031 = vld [vmem:[#allocation2 + $0x38] sm:$0xf]
        %v2032 = vld [vmem:[#allocation2 + $0x3c] sm:$0xf]
        %v2033 = vld [vmem:[#allocation2 + $0x40] sm:$0xf]
        %v2034 = vld [vmem:[#allocation2 + $0x44] sm:$0xf]
        %v2035 = vld [vmem:[#allocation2 + $0x48] sm:$0xf]
        %v2036 = vld [vmem:[#allocation2 + $0x4c] sm:$0xf]
        %v2037 = vld [vmem:[#allocation2 + $0x50] sm:$0xf]
        %v2038 = vld [vmem:[#allocation2 + $0x54] sm:$0xf]
        %v2039 = vld [vmem:[#allocation2 + $0x58] sm:$0xf]
        %v2040 = vld [vmem:[#allocation2 + $0x5c] sm:$0xf]
        %v2041 = vld [vmem:[#allocation2 + $0x60] sm:$0xf]
        %v2042 = vld [vmem:[#allocation2 + $0x64] sm:$0xf]
        %v2043 = vld [vmem:[#allocation2 + $0x68] sm:$0xf]
        %v2044 = vld [vmem:[#allocation2 + $0x6c] sm:$0xf]
        %v2045 = vld [vmem:[#allocation2 + $0x70] sm:$0xf]
        %v2046 = vld [vmem:[#allocation2 + $0x74] sm:$0xf]
        %v2047 = vld [vmem:[#allocation2 + $0x78] sm:$0xf]
        %v2048 = vld [vmem:[#allocation2 + $0x7c] sm:$0xf]
        %v2049 = vld [vmem:[%s267] sm:$0xf]
        %v2050 = vld [vmem:[%s267 + $0x4] sm:$0xf]
        %v2051 = vld [vmem:[%s267 + $0x8] sm:$0xf]
        %v2052 = vld [vmem:[%s267 + $0xc] sm:$0xf]
        %v2053 = vld [vmem:[%s267 + $0x10] sm:$0x3]
        %v2086 = vunpack.c.l.b16 %v2017
        %v2087 = vunpack.c.l.b16 %v2018
        %v2088 = vunpack.c.l.b16 %v2019
        %v2089 = vunpack.c.l.b16 %v2020
        %v2090 = vunpack.c.l.b16 %v2021
        %v2091 = vunpack.c.l.b16 %v2022
        %v2092 = vunpack.c.l.b16 %v2023
        %v2093 = vunpack.c.l.b16 %v2024
        %v2094 = vunpack.c.l.b16 %v2025
        %v2095 = vunpack.c.l.b16 %v2026
        %v2096 = vunpack.c.l.b16 %v2027
        %v2097 = vunpack.c.l.b16 %v2028
        %v2098 = vunpack.c.l.b16 %v2029
        %v2099 = vunpack.c.l.b16 %v2030
        %v2100 = vunpack.c.l.b16 %v2031
        %v2101 = vunpack.c.l.b16 %v2032
        %v2102 = vunpack.c.l.b16 %v2033
        %v2103 = vunpack.c.l.b16 %v2034
        %v2104 = vunpack.c.l.b16 %v2035
        %v2105 = vunpack.c.l.b16 %v2036
        %v2106 = vunpack.c.l.b16 %v2037
        %v2107 = vunpack.c.l.b16 %v2038
        %v2108 = vunpack.c.l.b16 %v2039
        %v2109 = vunpack.c.l.b16 %v2040
        %v2110 = vunpack.c.l.b16 %v2041
        %v2111 = vunpack.c.l.b16 %v2042
        %v2112 = vunpack.c.l.b16 %v2043
        %v2113 = vunpack.c.l.b16 %v2044
        %v2114 = vunpack.c.l.b16 %v2045
        %v2115 = vunpack.c.l.b16 %v2046
        %v2116 = vunpack.c.l.b16 %v2047
        %v2117 = vunpack.c.l.b16 %v2048
        %v2118 = vpack.c.b16 %v2087, %v2086
        %v2119 = vpack.c.b16 %v2089, %v2088
        %v2120 = vpack.c.b16 %v2091, %v2090
        %v2121 = vpack.c.b16 %v2093, %v2092
        %v2122 = vpack.c.b16 %v2095, %v2094
        %v2123 = vpack.c.b16 %v2097, %v2096
        %v2124 = vpack.c.b16 %v2099, %v2098
        %v2125 = vpack.c.b16 %v2101, %v2100
        %v2126 = vpack.c.b16 %v2103, %v2102
        %v2127 = vpack.c.b16 %v2105, %v2104
        %v2128 = vpack.c.b16 %v2107, %v2106
        %v2129 = vpack.c.b16 %v2109, %v2108
        %v2130 = vpack.c.b16 %v2111, %v2110
        %v2131 = vpack.c.b16 %v2113, %v2112
        %v2132 = vpack.c.b16 %v2115, %v2114
        %v2133 = vpack.c.b16 %v2117, %v2116
        %v2139 = vunpack.c.l.b16 %v2049
        %v2140 = vunpack.c.l.b16 %v2050
        %v2141 = vunpack.c.l.b16 %v2051
        %v2142 = vunpack.c.l.b16 %v2052
        %v2143 = vunpack.c.l.b16 %v2053
        %v2144 = vpack.c.b16 %v2140, %v2139
        %v2145 = vpack.c.b16 %v2142, %v2141
        %v2146 = vpack.c.b16 %v2143, %v2143
        %vm2149 = vcmask 293888
        %v2151 = vsel %vm2149, %v2118, 0
        %v2154 = vsel %vm2149, %v2119, 0
        %v2157 = vsel %vm2149, %v2120, 0
        %v2160 = vsel %vm2149, %v2121, 0
        %v2163 = vsel %vm2149, %v2122, 0
        %v2166 = vsel %vm2149, %v2123, 0
        %v2169 = vsel %vm2149, %v2124, 0
        %v2172 = vsel %vm2149, %v2125, 0
        %v2175 = vsel %vm2149, %v2126, 0
        %v2178 = vsel %vm2149, %v2127, 0
        %v2181 = vsel %vm2149, %v2128, 0
        %v2184 = vsel %vm2149, %v2129, 0
        %v2187 = vsel %vm2149, %v2130, 0
        %v2190 = vsel %vm2149, %v2131, 0
        %v2193 = vsel %vm2149, %v2132, 0
        %v2196 = vsel %vm2149, %v2133, 0
        %vm2198 = vcmask 1041408
        %v2200 = vsel %vm2198, %v2146, 0
        %2202 = vmatpush.bf16.msra.mxu0 0
        %2203 = vmatpush.bf16.msra.mxu0 0
        %2204 = vmatpush.bf16.msra.mxu0 0
        %2205 = vmatpush.bf16.msra.mxu0 0
        %2206 = vmatpush.bf16.msra.mxu0 0
        %2207 = vmatpush.bf16.msra.mxu0 %v2200
        %2208 = vmatpush.bf16.msra.mxu0 %v2145
        %2209 = vmatpush.bf16.msra.mxu0 %v2144
        %2210 = vmatmul.bf16.gmra.mxu0 %v2151
        %v2211 = vpop.f32.mrf.mxu0
        %v2212 = vadd.f32 0.0, %v2211
        %v2213 = vpop.f32.mrf.mxu0
        %v2214 = vadd.f32 0.0, %v2213
        %2215 = vmatmul.bf16.gmra.mxu0 %v2154
        %v2216 = vpop.f32.mrf.mxu0
        %v2217 = vadd.f32 0.0, %v2216
        %v2218 = vpop.f32.mrf.mxu0
        %v2219 = vadd.f32 0.0, %v2218
        %2220 = vmatmul.bf16.gmra.mxu0 %v2157
        %v2221 = vpop.f32.mrf.mxu0
        %v2222 = vadd.f32 0.0, %v2221
        %v2223 = vpop.f32.mrf.mxu0
        %v2224 = vadd.f32 0.0, %v2223
        %2225 = vmatmul.bf16.gmra.mxu0 %v2160
        %v2226 = vpop.f32.mrf.mxu0
        %v2227 = vadd.f32 0.0, %v2226
        %v2228 = vpop.f32.mrf.mxu0
        %v2229 = vadd.f32 0.0, %v2228
        %2230 = vmatmul.bf16.gmra.mxu0 %v2163
        %v2231 = vpop.f32.mrf.mxu0
        %v2232 = vadd.f32 0.0, %v2231
        %v2233 = vpop.f32.mrf.mxu0
        %v2234 = vadd.f32 0.0, %v2233
        %2235 = vmatmul.bf16.gmra.mxu0 %v2166
        %v2236 = vpop.f32.mrf.mxu0
        %v2237 = vadd.f32 0.0, %v2236
        %v2238 = vpop.f32.mrf.mxu0
        %v2239 = vadd.f32 0.0, %v2238
        %2240 = vmatmul.bf16.gmra.mxu0 %v2169
        %v2241 = vpop.f32.mrf.mxu0
        %v2242 = vadd.f32 0.0, %v2241
        %v2243 = vpop.f32.mrf.mxu0
        %v2244 = vadd.f32 0.0, %v2243
        %2245 = vmatmul.bf16.gmra.mxu0 %v2172
        %v2246 = vpop.f32.mrf.mxu0
        %v2247 = vadd.f32 0.0, %v2246
        %v2248 = vpop.f32.mrf.mxu0
        %v2249 = vadd.f32 0.0, %v2248
        %2250 = vmatmul.bf16.gmra.mxu0 %v2175
        %v2251 = vpop.f32.mrf.mxu0
        %v2252 = vadd.f32 0.0, %v2251
        %v2253 = vpop.f32.mrf.mxu0
        %v2254 = vadd.f32 0.0, %v2253
        %2255 = vmatmul.bf16.gmra.mxu0 %v2178
        %v2256 = vpop.f32.mrf.mxu0
        %v2257 = vadd.f32 0.0, %v2256
        %v2258 = vpop.f32.mrf.mxu0
        %v2259 = vadd.f32 0.0, %v2258
        %2260 = vmatmul.bf16.gmra.mxu0 %v2181
        %v2261 = vpop.f32.mrf.mxu0
        %v2262 = vadd.f32 0.0, %v2261
        %v2263 = vpop.f32.mrf.mxu0
        %v2264 = vadd.f32 0.0, %v2263
        %2265 = vmatmul.bf16.gmra.mxu0 %v2184
        %v2266 = vpop.f32.mrf.mxu0
        %v2267 = vadd.f32 0.0, %v2266
        %v2268 = vpop.f32.mrf.mxu0
        %v2269 = vadd.f32 0.0, %v2268
        %2270 = vmatmul.bf16.gmra.mxu0 %v2187
        %v2271 = vpop.f32.mrf.mxu0
        %v2272 = vadd.f32 0.0, %v2271
        %v2273 = vpop.f32.mrf.mxu0
        %v2274 = vadd.f32 0.0, %v2273
        %2275 = vmatmul.bf16.gmra.mxu0 %v2190
        %v2276 = vpop.f32.mrf.mxu0
        %v2277 = vadd.f32 0.0, %v2276
        %v2278 = vpop.f32.mrf.mxu0
        %v2279 = vadd.f32 0.0, %v2278
        %2280 = vmatmul.bf16.gmra.mxu0 %v2193
        %v2281 = vpop.f32.mrf.mxu0
        %v2282 = vadd.f32 0.0, %v2281
        %v2283 = vpop.f32.mrf.mxu0
        %v2284 = vadd.f32 0.0, %v2283
        %2285 = vmatmul.bf16.gmra.mxu0 %v2196
        %v2286 = vpop.f32.mrf.mxu0
        %v2287 = vadd.f32 0.0, %v2286
        %v2288 = vpop.f32.mrf.mxu0
        %v2289 = vadd.f32 0.0, %v2288
        %2290 = vdwg.mxu0
        %v2291 = vld [vmem:[%s270] sm:$0x1]
        %v2293 = vperm.slane %v2291, 0
        %v2295 = vmul.f32 %v2212, %v2293
        %v2296 = vmul.f32 %v2214, %v2293
        %v2297 = vmul.f32 %v2217, %v2293
        %v2298 = vmul.f32 %v2219, %v2293
        %v2299 = vmul.f32 %v2222, %v2293
        %v2300 = vmul.f32 %v2224, %v2293
        %v2301 = vmul.f32 %v2227, %v2293
        %v2302 = vmul.f32 %v2229, %v2293
        %v2303 = vmul.f32 %v2232, %v2293
        %v2304 = vmul.f32 %v2234, %v2293
        %v2305 = vmul.f32 %v2237, %v2293
        %v2306 = vmul.f32 %v2239, %v2293
        %v2307 = vmul.f32 %v2242, %v2293
        %v2308 = vmul.f32 %v2244, %v2293
        %v2309 = vmul.f32 %v2247, %v2293
        %v2310 = vmul.f32 %v2249, %v2293
        %v2311 = vmul.f32 %v2252, %v2293
        %v2312 = vmul.f32 %v2254, %v2293
        %v2313 = vmul.f32 %v2257, %v2293
        %v2314 = vmul.f32 %v2259, %v2293
        %v2315 = vmul.f32 %v2262, %v2293
        %v2316 = vmul.f32 %v2264, %v2293
        %v2317 = vmul.f32 %v2267, %v2293
        %v2318 = vmul.f32 %v2269, %v2293
        %v2319 = vmul.f32 %v2272, %v2293
        %v2320 = vmul.f32 %v2274, %v2293
        %v2321 = vmul.f32 %v2277, %v2293
        %v2322 = vmul.f32 %v2279, %v2293
        %v2323 = vmul.f32 %v2282, %v2293
        %v2324 = vmul.f32 %v2284, %v2293
        %v2325 = vmul.f32 %v2287, %v2293
        %v2326 = vmul.f32 %v2289, %v2293
        %v2327 = vld [vmem:[%s273] sm:$0x1]
        %v2329 = vperm.slane %v2327, 0
        %v2331 = vadd.f32 %v2295, %v2329
        %v2332 = vadd.f32 %v2296, %v2329
        %v2333 = vadd.f32 %v2297, %v2329
        %v2334 = vadd.f32 %v2298, %v2329
        %v2335 = vadd.f32 %v2299, %v2329
        %v2336 = vadd.f32 %v2300, %v2329
        %v2337 = vadd.f32 %v2301, %v2329
        %v2338 = vadd.f32 %v2302, %v2329
        %v2339 = vadd.f32 %v2303, %v2329
        %v2340 = vadd.f32 %v2304, %v2329
        %v2341 = vadd.f32 %v2305, %v2329
        %v2342 = vadd.f32 %v2306, %v2329
        %v2343 = vadd.f32 %v2307, %v2329
        %v2344 = vadd.f32 %v2308, %v2329
        %v2345 = vadd.f32 %v2309, %v2329
        %v2346 = vadd.f32 %v2310, %v2329
        %v2347 = vadd.f32 %v2311, %v2329
        %v2348 = vadd.f32 %v2312, %v2329
        %v2349 = vadd.f32 %v2313, %v2329
        %v2350 = vadd.f32 %v2314, %v2329
        %v2351 = vadd.f32 %v2315, %v2329
        %v2352 = vadd.f32 %v2316, %v2329
        %v2353 = vadd.f32 %v2317, %v2329
        %v2354 = vadd.f32 %v2318, %v2329
        %v2355 = vadd.f32 %v2319, %v2329
        %v2356 = vadd.f32 %v2320, %v2329
        %v2357 = vadd.f32 %v2321, %v2329
        %v2358 = vadd.f32 %v2322, %v2329
        %v2359 = vadd.f32 %v2323, %v2329
        %v2360 = vadd.f32 %v2324, %v2329
        %v2361 = vadd.f32 %v2325, %v2329
        %v2362 = vadd.f32 %v2326, %v2329
        %v2363 = vmax.f32 %v2331, 0.0
        %v2364 = vmax.f32 %v2332, 0.0
        %v2365 = vmax.f32 %v2333, 0.0
        %v2366 = vmax.f32 %v2334, 0.0
        %v2367 = vmax.f32 %v2335, 0.0
        %v2368 = vmax.f32 %v2336, 0.0
        %v2369 = vmax.f32 %v2337, 0.0
        %v2370 = vmax.f32 %v2338, 0.0
        %v2371 = vmax.f32 %v2339, 0.0
        %v2372 = vmax.f32 %v2340, 0.0
        %v2373 = vmax.f32 %v2341, 0.0
        %v2374 = vmax.f32 %v2342, 0.0
        %v2375 = vmax.f32 %v2343, 0.0
        %v2376 = vmax.f32 %v2344, 0.0
        %v2377 = vmax.f32 %v2345, 0.0
        %v2378 = vmax.f32 %v2346, 0.0
        %v2379 = vmax.f32 %v2347, 0.0
        %v2380 = vmax.f32 %v2348, 0.0
        %v2381 = vmax.f32 %v2349, 0.0
        %v2382 = vmax.f32 %v2350, 0.0
        %v2383 = vmax.f32 %v2351, 0.0
        %v2384 = vmax.f32 %v2352, 0.0
        %v2385 = vmax.f32 %v2353, 0.0
        %v2386 = vmax.f32 %v2354, 0.0
        %v2387 = vmax.f32 %v2355, 0.0
        %v2388 = vmax.f32 %v2356, 0.0
        %v2389 = vmax.f32 %v2357, 0.0
        %v2390 = vmax.f32 %v2358, 0.0
        %v2391 = vmax.f32 %v2359, 0.0
        %v2392 = vmax.f32 %v2360, 0.0
        %v2393 = vmax.f32 %v2361, 0.0
        %v2394 = vmax.f32 %v2362, 0.0
        %2395 = vst [vmem:[%s255] sm:$0xff] %v2363
        %2396 = vst [vmem:[%s255 + $0x8] sm:$0xff] %v2364
        %2397 = vst [vmem:[%s255 + $0x10] sm:$0xff] %v2365
        %2398 = vst [vmem:[%s255 + $0x18] sm:$0xff] %v2366
        %2399 = vst [vmem:[%s255 + $0x20] sm:$0xff] %v2367
        %2400 = vst [vmem:[%s255 + $0x28] sm:$0xff] %v2368
        %2401 = vst [vmem:[%s255 + $0x30] sm:$0xff] %v2369
        %2402 = vst [vmem:[%s255 + $0x38] sm:$0xff] %v2370
        %2403 = vst [vmem:[%s255 + $0x40] sm:$0xff] %v2371
        %2404 = vst [vmem:[%s255 + $0x48] sm:$0xff] %v2372
        %2405 = vst [vmem:[%s255 + $0x50] sm:$0xff] %v2373
        %2406 = vst [vmem:[%s255 + $0x58] sm:$0xff] %v2374
        %2407 = vst [vmem:[%s255 + $0x60] sm:$0xff] %v2375
        %2408 = vst [vmem:[%s255 + $0x68] sm:$0xff] %v2376
        %2409 = vst [vmem:[%s255 + $0x70] sm:$0xff] %v2377
        %2410 = vst [vmem:[%s255 + $0x78] sm:$0xff] %v2378
        %2411 = vst [vmem:[%s255 + $0x80] sm:$0xff] %v2379
        %2412 = vst [vmem:[%s255 + $0x88] sm:$0xff] %v2380
        %2413 = vst [vmem:[%s255 + $0x90] sm:$0xff] %v2381
        %2414 = vst [vmem:[%s255 + $0x98] sm:$0xff] %v2382
        %2415 = vst [vmem:[%s255 + $0xa0] sm:$0xff] %v2383
        %2416 = vst [vmem:[%s255 + $0xa8] sm:$0xff] %v2384
        %2417 = vst [vmem:[%s255 + $0xb0] sm:$0xff] %v2385
        %2418 = vst [vmem:[%s255 + $0xb8] sm:$0xff] %v2386
        %2419 = vst [vmem:[%s255 + $0xc0] sm:$0xff] %v2387
        %2420 = vst [vmem:[%s255 + $0xc8] sm:$0xff] %v2388
        %2421 = vst [vmem:[%s255 + $0xd0] sm:$0xff] %v2389
        %2422 = vst [vmem:[%s255 + $0xd8] sm:$0xff] %v2390
        %2423 = vst [vmem:[%s255 + $0xe0] sm:$0xff] %v2391
        %2424 = vst [vmem:[%s255 + $0xe8] sm:$0xff] %v2392
        %2425 = vst [vmem:[%s255 + $0xf0] sm:$0xff] %v2393
        %2426 = vst [vmem:[%s255 + $0xf8] sm:$0xff] %v2394
        %s2427 = sand.u32 %s155, 1
        %s2428 = scalar_lea.sflag [#allocation4], %s2427
        %s2429 = sand.u32 %s155, 1
        %s2430 = smul.addr %s2429, 256
        %s2431 = scalar_lea.vmem [#allocation3], %s2430
        // Predicated region
        $region41: #{tpu_custom_call.1} parent=35 // pred_check
          %p2432 = pneg %p165
        $region42: #{tpu_custom_call.1} parent=35 // pred_check_branch
          %2434 = sbr.rel (%p2432) target = $region44
        $region43: #{tpu_custom_call.1} parent=35 // pred_region
          %s2435 = smul.u32 16, %s24
          %2437 = vsyncadd %s2428, 0
          %s2438 = smul.addr %s2435, 2
          %s2439 = sadd.s32 %s25, %s2438
          %s2440 = smul.addr %s23, 32
          %s2441 = sadd.s32 %s2439, %s2440
          %s2442 = smul.addr %s2441, 8
          %s2443 = scalar_lea.hbm %s4, %s2442
          %s2444 = sshll.u32 %s2431, 4
          %s2445 = int_to_ptr.vmem [resolvable:$true] %s2444
          %s2446 = sshll.u32 %s2443, 4
          %s2447 = int_to_ptr.hbm [resolvable:$true] %s2446
          %2452 = dma.vmem_to_hbm [thread:$0]  %s2445, 4096, %s2447, %s2428, 128, 128, 8
        $region44: #{tpu_custom_call.1} parent=35 // pred_fallthru
          _
      $region36: #{tpu_custom_call.1} parent=5 // pred_fallthru
        _
      %p2453 = scmp.le.s32.totalorder 2, %s13
      // Predicated region
      $region45: #{tpu_custom_call.1} parent=5 // pred_check
        %p2454 = pneg %p2453
      $region46: #{tpu_custom_call.1} parent=5 // pred_check_branch
        %2456 = sbr.rel (%p2454) target = $region48
      $region47: #{tpu_custom_call.1} parent=5 // pred_region
        %s2457 = ssub.s32 %s13, 2
        // Predicated region
        $region49: #{tpu_custom_call.1} parent=47 // pred_check
          %p2458 = pneg %p171
        $region50: #{tpu_custom_call.1} parent=47 // pred_check_branch
          %2460 = sbr.rel (%p2458) target = $region52
        $region51: #{tpu_custom_call.1} parent=47 // pred_region
          %s2461 = sand.u32 %s156, 1
          %s2462 = scalar_lea.sflag [#allocation4], %s2461
          %s2463 = sand.u32 %s156, 1
          %s2464 = smul.addr %s2463, 256
          %s2465 = scalar_lea.vmem [#allocation3], %s2464
          %2467 = dma.done %s2462, 4096
        $region52: #{tpu_custom_call.1} parent=47 // pred_fallthru
          _
      $region48: #{tpu_custom_call.1} parent=5 // pred_fallthru
        _
    $region6: #{tpu_custom_call.1} parent=1 // loop_footer
      %s17 = sadd.s32 1, %s13
    $region7: #{tpu_custom_call.1} parent=1 // loop_footer_branch
      %12 = sbr.rel target = $region3
    $region8: #{tpu_custom_call.1} parent=1 // loop_exit
      _
    %2468 = vsyncpa [#allocation4], 1
    %s2469 = scalar_lea.sflag [#allocation4], 1
    %2470 = vsyncpa %s2469, 1

</llo_original>
